<compile_context>
chip_gen: v7x
topology: tpu7x:2x2x1
jax: 0.10.0
libtpu: 0.0.40
codegen_flags: <defaults>
</compile_context>

<pallas_src>
import jax
import jax.numpy as jnp
from jax import lax
from jax.experimental import pallas as pl
from jax.experimental.pallas import tpu as pltpu


def self_attention_kernel(xg_ref,              # (1, N, C) bf16, resident across q tiles
                          wall_ref, ball_ref,  # fused theta|phi|g weights (C, 2*c8+c2) bf16, (1, 2*c8+c2) f32
                          wo_ref, bo_ref,      # conv_attn (c2, C) bf16, (1, C) f32
                          sigma_ref,           # (1, 1) f32 in SMEM
                          out_ref,             # (1, TQ, C) f32
                          theta_s, phi_s, g_s):  # VMEM scratch (bf16): theta(N,c8), pooled phi(N4,c8), pooled g(N4,c2)
    qi = pl.program_id(1)
    tq = out_ref.shape[1]
    n4, c8 = phi_s.shape

    # ---- once per batch: fused theta/phi/g projection of all pixels + 2x2 max-pool ----
    @pl.when(qi == 0)
    def _():
        pg = jnp.dot(xg_ref[0], wall_ref[...],
                     preferred_element_type=jnp.float32) + ball_ref[...]          # (N, 2*c8+c2)
        theta_s[...] = pg[:, :c8].astype(jnp.bfloat16)                            # queries, all N pixels
        rest = pg[:, c8:]                                                         # (N, c8+c2) phi|g
        pooled = jnp.maximum(jnp.maximum(rest[0 * n4:1 * n4], rest[1 * n4:2 * n4]),
                             jnp.maximum(rest[2 * n4:3 * n4], rest[3 * n4:4 * n4]))
        phi_s[...] = pooled[:, :c8].astype(jnp.bfloat16)
        g_s[...] = pooled[:, c8:].astype(jnp.bfloat16)

    # ---- per query tile (no per-tile theta matmul anymore) --------------------------
    q0 = pl.multiple_of(qi * tq, tq)
    theta = theta_s[pl.ds(q0, tq), :]                                             # (TQ, c8) bf16

    # attn = softmax(theta @ phi^T)
    logits = lax.dot_general(theta, phi_s[...], (((1,), (1,)), ((), ())),
                             preferred_element_type=jnp.float32)                  # (TQ, N4)
    m = jnp.max(logits, axis=-1, keepdims=True)
    p = jnp.exp(logits - m)
    denom = jnp.sum(p, axis=-1, keepdims=True)
    attn = p * pl.reciprocal(denom, approx=True)

    # attn_g = conv_attn(attn @ g), residual in f32
    attn_g = jnp.dot(attn.astype(jnp.bfloat16), g_s[...],
                     preferred_element_type=jnp.float32)                          # (TQ, c2)
    y = jnp.dot(attn_g.astype(jnp.bfloat16), wo_ref[...],
                preferred_element_type=jnp.float32) + bo_ref[...]                 # (TQ, C)

    xq = xg_ref[0, pl.ds(q0, tq), :].astype(jnp.float32)                          # residual (bf16 -> f32)
    out_ref[0] = (xq + sigma_ref[0, 0] * y).astype(out_ref.dtype)


def _padded_tile_bytes(rows, cols, itemsize):
    # rough VMEM footprint of an (rows, cols) tile after (8, 128) padding
    return (-(-rows // 8) * 8) * (-(-cols // 128) * 128) * itemsize


def _pick_tq(N, N4, vmem_cap):
    """Largest multiple-of-8 divisor of N under an MXU/VMEM-derived cap."""
    n4_pad = -(-N4 // 128) * 128
    cap = 256                              # v6e/v7x MXU M-dim; also fine for v5e
    budget = vmem_cap // 8                 # intermediates budget (shrinks on v7x)
    while cap > 8 and 3 * cap * n4_pad * 4 > budget:
        cap //= 2
    cands = [d for d in range(8, min(cap, N) + 1, 8) if N % d == 0]
    return max(cands) if cands else N      # N itself is always a legal block


def self_attention_pallas(x_nchw, params, tq=None):
    B, C, W, H = x_nchw.shape
    assert C % 8 == 0 and W % 2 == 0 and H % 2 == 0
    N = W * H
    N4 = N // 4
    c8, c2 = C // 8, C // 2
    ctot = 2 * c8 + c2

    # Single input stream: channels-last, pool-grouped order, bf16 in HBM.
    # NOTE: in a real pipeline this grouped layout should be produced/consumed
    # end-to-end; here the wrapper transposes are the NCHW adapter.
    x_grp = (x_nchw.reshape(B, C, W // 2, 2, H // 2, 2)
                   .transpose(0, 3, 5, 2, 4, 1)            # (B, 2, 2, W/2, H/2, C)
                   .reshape(B, N, C)
                   .astype(jnp.bfloat16))

    (w_th, b_th), (w_ph, b_ph), (w_g, b_g), (w_o, b_o) = (
        params["theta"], params["phi"], params["g"], params["attn"])

    # theta, phi, g projections fused into one RHS (shared LHS, lane-denser RHS).
    w_all_bf = jnp.concatenate([w_th, w_ph, w_g], axis=1).astype(jnp.bfloat16)   # (C, ctot)
    b_all = jnp.concatenate([b_th, b_ph, b_g], axis=1).astype(jnp.float32)       # (1, ctot)
    w_o_bf = w_o.astype(jnp.bfloat16)
    b_o = b_o.astype(jnp.float32)
    sigma = params["sigma"].reshape(1, 1).astype(jnp.float32)

    # Generation-aware VMEM capacity (v5e/v6e: 128 MiB, v7x: 64 MiB per TC).
    try:
        vmem_cap = int(pltpu.get_tpu_info().vmem_capacity_bytes)
    except Exception:
        vmem_cap = 128 * 2 ** 20

    if tq is None:
        tq = _pick_tq(N, N4, vmem_cap)
    assert N % tq == 0
    nq = N // tq

    # Scoped-VMEM budget: blocks + scratch + intermediates (incl. qi==0 projection),
    # (8,128)-padded, with 2x headroom, capped at 75% of physical VMEM.
    est = (2 * _padded_tile_bytes(N, C, 2)              # resident bf16 image block (double-buffered)
           + 2 * _padded_tile_bytes(tq, C, 4)           # double-buffered f32 out block
           + _padded_tile_bytes(N, ctot, 4)             # qi==0 fused projection (f32)
           + _padded_tile_bytes(N4, ctot, 4)            # pooled intermediate
           + _padded_tile_bytes(N, c8, 2)               # theta scratch
           + _padded_tile_bytes(N4, c8, 2) + _padded_tile_bytes(N4, c2, 2)
           + 3 * _padded_tile_bytes(tq, N4, 4)          # logits / p / attn
           + 3 * _padded_tile_bytes(tq, C, 4)           # attn_g / y / residual
           + 2 * (_padded_tile_bytes(C, ctot, 2) + _padded_tile_bytes(c2, C, 2)
                  + _padded_tile_bytes(1, ctot, 4) + _padded_tile_bytes(1, C, 4)))
    vmem_limit = int(min(max(2 * est, 16 * 2 ** 20), int(0.75 * vmem_cap)))

    out_grp = pl.pallas_call(
        self_attention_kernel,
        out_shape=jax.ShapeDtypeStruct((B, N, C), x_nchw.dtype),
        grid_spec=pltpu.PrefetchScalarGridSpec(
            num_scalar_prefetch=0,
            grid=(B, nq),
            in_specs=[
                pl.BlockSpec((1, N, C), lambda b, q: (b, 0, 0)),       # stays resident over q
                pl.BlockSpec((C, ctot), lambda b, q: (0, 0)),
                pl.BlockSpec((1, ctot), lambda b, q: (0, 0)),
                pl.BlockSpec((c2, C), lambda b, q: (0, 0)),
                pl.BlockSpec((1, C), lambda b, q: (0, 0)),
                pl.BlockSpec((1, 1), lambda b, q: (0, 0),
                             memory_space=pltpu.MemorySpace.SMEM),     # sigma scalar
            ],
            out_specs=pl.BlockSpec((1, tq, C), lambda b, q: (b, q, 0)),
            scratch_shapes=[pltpu.VMEM((N, c8), jnp.bfloat16),         # theta (queries)
                            pltpu.VMEM((N4, c8), jnp.bfloat16),        # pooled phi (keys)
                            pltpu.VMEM((N4, c2), jnp.bfloat16)],       # pooled g (values)
        ),
        compiler_params=pltpu.CompilerParams(
            # batch axis megacore-parallel; q axis arbitrary (per-batch scratch init)
            dimension_semantics=("parallel", "arbitrary"),
            vmem_limit_bytes=vmem_limit),
    )(x_grp, w_all_bf, b_all, w_o_bf, b_o, sigma)

    # Undo the pool-grouped ordering -> NCHW.
    return (out_grp.reshape(B, 2, 2, W // 2, H // 2, C)
                   .transpose(0, 5, 3, 1, 4, 2)            # (B, C, W/2, 2, H/2, 2)
                   .reshape(B, C, W, H))


# ---------------- parameter init (deterministic, in-script) ----------------

def _spectral_normalize(w, iters=50):
    # power iteration (converged limit of torch.nn.utils.spectral_norm)
    u = jnp.ones((w.shape[0],), w.dtype)
    v = jnp.ones((w.shape[1],), w.dtype)
    for _ in range(iters):
        v = w.T @ u
        v = v / (jnp.linalg.norm(v) + 1e-12)
        u = w @ v
        u = u / (jnp.linalg.norm(u) + 1e-12)
    s = u @ (w @ v)
    return w / s


def init_params(key, C):
    c8, c2 = C // 8, C // 2
    ks = jax.random.split(key, 8)

    def conv(kin, kout, kw, kb):
        # stored as (in, out) so the kernel does x @ W; spectral norm is
        # transpose-invariant so normalizing the (in, out) matrix is equivalent.
        w = _spectral_normalize(jax.random.normal(kw, (kin, kout), jnp.float32) * 0.1)
        b = jax.random.normal(kb, (1, kout), jnp.float32) * 0.05
        return w, b

    return {
        "theta": conv(C, c8, ks[0], ks[1]),
        "phi": conv(C, c8, ks[2], ks[3]),
        "g": conv(C, c2, ks[4], ks[5]),
        "attn": conv(c2, C, ks[6], ks[7]),
        # nn.Parameter(torch.zeros(1)) in the module; set nonzero here so the
        # attention path is actually exercised by the test.
        "sigma": jnp.array([0.5], jnp.float32),
    }


# ---------------- pure-JAX reference for verification ----------------

def self_attention_ref(x, params):
    B, C, W, H = x.shape
    N, N4, c8, c2 = W * H, (W * H) // 4, C // 8, C // 2
    conv = lambda t, w, b: jnp.einsum("bchw,co->bohw", t, w) + b.reshape(1, -1, 1, 1)
    pool = lambda t: t.reshape(B, -1, W // 2, 2, H // 2, 2).max(axis=(3, 5))

    theta = conv(x, *params["theta"]).reshape(B, c8, N).transpose(0, 2, 1)        # (B, N, c8)
    phi = pool(conv(x, *params["phi"])).reshape(B, c8, N4)                        # (B, c8, N4)
    attn = jax.nn.softmax(jnp.einsum("bnc,bcm->bnm", theta, phi), axis=-1)        # (B, N, N4)
    g = pool(conv(x, *params["g"])).reshape(B, c2, N4).transpose(0, 2, 1)         # (B, N4, c2)
    attn_g = jnp.einsum("bnm,bmc->bnc", attn, g).transpose(0, 2, 1)               # (B, c2, N)
    attn_g = conv(attn_g.reshape(B, c2, W, H), *params["attn"])                   # (B, C, W, H)
    return x + params["sigma"][0] * attn_g


if __name__ == "__main__":
    B, C, W, H = 2, 16, 16, 16           # in_dim = 16 (divisible by 8)
    key = jax.random.PRNGKey(0)
    kx, kp = jax.random.split(key)
    x = jax.random.normal(kx, (B, C, W, H), jnp.float32)
    params = init_params(kp, C)

    ref = self_attention_ref(x, params)

    # Run with the auto tile (single query tile at this size) and with an explicit
    # smaller tile to exercise the multi-tile path + per-batch projection-scratch reuse.
    for tq in (None, 64):
        run = jax.jit(lambda xx, pp, t=tq: self_attention_pallas(xx, pp, tq=t))
        out = jax.block_until_ready(run(x, params))
        assert out.shape == (B, C, W, H)
        err = jnp.max(jnp.abs(out - ref))
        # bf16 image/MXU operands + approximate reciprocal -> looser tolerance than pure f32.
        assert jnp.allclose(out, ref, atol=5e-2, rtol=5e-2), (
            f"tq={tq}: max abs diff {err}")
    print("KERNEL_OK")
</pallas_src>

<mosaic_0001>
module attributes {stable_mosaic.version = 11 : i64} {
  func.func @self_attention_kernel(%arg0: i32, %arg1: i32, %arg2: memref<1x256x16xbf16, #tpu.memory_space<vmem>>, %arg3: memref<16x12xbf16, #tpu.memory_space<vmem>>, %arg4: memref<1x12xf32, #tpu.memory_space<vmem>>, %arg5: memref<8x16xbf16, #tpu.memory_space<vmem>>, %arg6: memref<1x16xf32, #tpu.memory_space<vmem>>, %arg7: memref<1x1xf32, #tpu.memory_space<smem>>, %arg8: memref<1x256x16xf32, #tpu.memory_space<vmem>>, %arg9: memref<256x2xbf16, #tpu.memory_space<vmem>>, %arg10: memref<64x2xbf16, #tpu.memory_space<vmem>>, %arg11: memref<64x8xbf16, #tpu.memory_space<vmem>>) attributes {dimension_semantics = [#tpu.dimension_semantics<parallel>, #tpu.dimension_semantics<arbitrary>], iteration_bounds = array<i64: 2, 1>, scalar_prefetch = 0 : i64, scratch_operands = 3 : i64, tpu.core_type = #tpu.core_type<tc>, window_params = [{transform_indices = @transform_0, window_bounds = array<i64: 1, 256, 16>}, {pipeline_mode = #tpu.pipeline_mode<synchronous>, transform_indices = @transform_1, window_bounds = array<i64: 16, 12>}, {pipeline_mode = #tpu.pipeline_mode<synchronous>, transform_indices = @transform_2, window_bounds = array<i64: 1, 12>}, {pipeline_mode = #tpu.pipeline_mode<synchronous>, transform_indices = @transform_3, window_bounds = array<i64: 8, 16>}, {pipeline_mode = #tpu.pipeline_mode<synchronous>, transform_indices = @transform_4, window_bounds = array<i64: 1, 16>}, {transform_indices = @transform_5, window_bounds = array<i64: 1, 1>}, {transform_indices = @transform_6, window_bounds = array<i64: 1, 256, 16>}]} {
    %c0_i32 = arith.constant 0 : i32
    %0 = arith.cmpi eq, %arg1, %c0_i32 : i32
    %1 = arith.extui %0 : i1 to i32
    %c0_i32_0 = arith.constant 0 : i32
    %2 = arith.cmpi ne, %1, %c0_i32_0 : i32
    scf.if %2 {
      %c0_20 = arith.constant 0 : index
      %c0_21 = arith.constant 0 : index
      %c0_22 = arith.constant 0 : index
      %39 = vector.load %arg2[%c0_20, %c0_21, %c0_22] : memref<1x256x16xbf16, #tpu.memory_space<vmem>>, vector<1x256x16xbf16>
      %40 = vector.shape_cast %39 : vector<1x256x16xbf16> to vector<256x16xbf16>
      %c0_23 = arith.constant 0 : index
      %c0_24 = arith.constant 0 : index
      %41 = vector.load %arg3[%c0_23, %c0_24] : memref<16x12xbf16, #tpu.memory_space<vmem>>, vector<16x12xbf16>
      %cst_25 = arith.constant dense<0.000000e+00> : vector<256x12xf32>
      %42 = tpu.matmul %40, %41, %cst_25 {dimension_numbers = #tpu.dot_dimension_numbers<[1], [0], [0], [1], [0, 0, 1, 1], [], []>} : vector<256x16xbf16>, vector<16x12xbf16>, vector<256x12xf32> -> vector<256x12xf32>
      %c0_26 = arith.constant 0 : index
      %c0_27 = arith.constant 0 : index
      %43 = vector.load %arg4[%c0_26, %c0_27] : memref<1x12xf32, #tpu.memory_space<vmem>>, vector<1x12xf32>
      %44 = vector.broadcast %43 : vector<1x12xf32> to vector<256x12xf32>
      %45 = arith.addf %42, %44 : vector<256x12xf32>
      %46 = vector.extract_strided_slice %45 {offsets = [0, 0], sizes = [256, 2], strides = [1, 1]} : vector<256x12xf32> to vector<256x2xf32>
      %47 = arith.truncf %46 : vector<256x2xf32> to vector<256x2xbf16>
      %c0_28 = arith.constant 0 : index
      %c0_29 = arith.constant 0 : index
      %48 = vector.load %arg9[%c0_28, %c0_29] : memref<256x2xbf16, #tpu.memory_space<vmem>>, vector<256x2xbf16>
      tpu.vector_store %arg9[%c0_28, %c0_29], %47 {strides = array<i32>} : memref<256x2xbf16, #tpu.memory_space<vmem>>, vector<256x2xbf16>,
      %49 = vector.extract_strided_slice %45 {offsets = [0, 2], sizes = [256, 10], strides = [1, 1]} : vector<256x12xf32> to vector<256x10xf32>
      %50 = vector.extract_strided_slice %49 {offsets = [0, 0], sizes = [64, 10], strides = [1, 1]} : vector<256x10xf32> to vector<64x10xf32>
      %51 = vector.extract_strided_slice %49 {offsets = [64, 0], sizes = [64, 10], strides = [1, 1]} : vector<256x10xf32> to vector<64x10xf32>
      %52 = arith.maximumf %50, %51 : vector<64x10xf32>
      %53 = vector.extract_strided_slice %49 {offsets = [128, 0], sizes = [64, 10], strides = [1, 1]} : vector<256x10xf32> to vector<64x10xf32>
      %54 = vector.extract_strided_slice %49 {offsets = [192, 0], sizes = [64, 10], strides = [1, 1]} : vector<256x10xf32> to vector<64x10xf32>
      %55 = arith.maximumf %53, %54 : vector<64x10xf32>
      %56 = arith.maximumf %52, %55 : vector<64x10xf32>
      %57 = vector.extract_strided_slice %56 {offsets = [0, 0], sizes = [64, 2], strides = [1, 1]} : vector<64x10xf32> to vector<64x2xf32>
      %58 = arith.truncf %57 : vector<64x2xf32> to vector<64x2xbf16>
      %c0_30 = arith.constant 0 : index
      %c0_31 = arith.constant 0 : index
      %59 = vector.load %arg10[%c0_30, %c0_31] : memref<64x2xbf16, #tpu.memory_space<vmem>>, vector<64x2xbf16>
      tpu.vector_store %arg10[%c0_30, %c0_31], %58 {strides = array<i32>} : memref<64x2xbf16, #tpu.memory_space<vmem>>, vector<64x2xbf16>,
      %60 = vector.extract_strided_slice %56 {offsets = [0, 2], sizes = [64, 8], strides = [1, 1]} : vector<64x10xf32> to vector<64x8xf32>
      %61 = arith.truncf %60 : vector<64x8xf32> to vector<64x8xbf16>
      %c0_32 = arith.constant 0 : index
      %c0_33 = arith.constant 0 : index
      %62 = vector.load %arg11[%c0_32, %c0_33] : memref<64x8xbf16, #tpu.memory_space<vmem>>, vector<64x8xbf16>
      tpu.vector_store %arg11[%c0_32, %c0_33], %61 {strides = array<i32>} : memref<64x8xbf16, #tpu.memory_space<vmem>>, vector<64x8xbf16>,
    } else {
    }
    %c256_i32 = arith.constant 256 : i32
    %3 = arith.muli %arg1, %c256_i32 : i32
    %4 = tpu.assume_multiple %3, 256 : i32
    %5 = arith.index_cast %4 : i32 to index
    %c0 = arith.constant 0 : index
    %6 = vector.load %arg9[%5, %c0] : memref<256x2xbf16, #tpu.memory_space<vmem>>, vector<256x2xbf16>
    %c0_1 = arith.constant 0 : index
    %c0_2 = arith.constant 0 : index
    %7 = vector.load %arg10[%c0_1, %c0_2] : memref<64x2xbf16, #tpu.memory_space<vmem>>, vector<64x2xbf16>
    %cst = arith.constant dense<0.000000e+00> : vector<256x64xf32>
    %8 = tpu.matmul %6, %7, %cst {dimension_numbers = #tpu.dot_dimension_numbers<[1], [1], [0], [0], [0, 0, 1, 0], [], []>} : vector<256x2xbf16>, vector<64x2xbf16>, vector<256x64xf32> -> vector<256x64xf32>
    %cst_3 = arith.constant dense<0xFF800000> : vector<256xf32>
    %9 = vector.multi_reduction <maximumf>, %8, %cst_3 [1] : vector<256x64xf32> to vector<256xf32>
    %10 = vector.shape_cast %9 : vector<256xf32> to vector<256x1xf32>
    %11 = vector.broadcast %10 : vector<256x1xf32> to vector<256x64xf32>
    %12 = arith.subf %8, %11 : vector<256x64xf32>
    %13 = math.exp %12 : vector<256x64xf32>
    %cst_4 = arith.constant dense<0.000000e+00> : vector<256xf32>
    %14 = vector.multi_reduction <add>, %13, %cst_4 [1] : vector<256x64xf32> to vector<256xf32>
    %15 = vector.shape_cast %14 : vector<256xf32> to vector<256x1xf32>
    %16 = tpu.reciprocal %15 {approx = true} : vector<256x1xf32> -> vector<256x1xf32>
    %17 = vector.broadcast %16 : vector<256x1xf32> to vector<256x64xf32>
    %18 = arith.mulf %13, %17 : vector<256x64xf32>
    %19 = arith.truncf %18 : vector<256x64xf32> to vector<256x64xbf16>
    %c0_5 = arith.constant 0 : index
    %c0_6 = arith.constant 0 : index
    %20 = vector.load %arg11[%c0_5, %c0_6] : memref<64x8xbf16, #tpu.memory_space<vmem>>, vector<64x8xbf16>
    %cst_7 = arith.constant dense<0.000000e+00> : vector<256x8xf32>
    %21 = tpu.matmul %19, %20, %cst_7 {dimension_numbers = #tpu.dot_dimension_numbers<[1], [0], [0], [1], [0, 0, 1, 1], [], []>} : vector<256x64xbf16>, vector<64x8xbf16>, vector<256x8xf32> -> vector<256x8xf32>
    %22 = arith.truncf %21 : vector<256x8xf32> to vector<256x8xbf16>
    %c0_8 = arith.constant 0 : index
    %c0_9 = arith.constant 0 : index
    %23 = vector.load %arg5[%c0_8, %c0_9] : memref<8x16xbf16, #tpu.memory_space<vmem>>, vector<8x16xbf16>
    %cst_10 = arith.constant dense<0.000000e+00> : vector<256x16xf32>
    %24 = tpu.matmul %22, %23, %cst_10 {dimension_numbers = #tpu.dot_dimension_numbers<[1], [0], [0], [1], [0, 0, 1, 1], [], []>} : vector<256x8xbf16>, vector<8x16xbf16>, vector<256x16xf32> -> vector<256x16xf32>
    %c0_11 = arith.constant 0 : index
    %c0_12 = arith.constant 0 : index
    %25 = vector.load %arg6[%c0_11, %c0_12] : memref<1x16xf32, #tpu.memory_space<vmem>>, vector<1x16xf32>
    %26 = vector.broadcast %25 : vector<1x16xf32> to vector<256x16xf32>
    %27 = arith.addf %24, %26 : vector<256x16xf32>
    %c0_13 = arith.constant 0 : index
    %28 = arith.index_cast %4 : i32 to index
    %c0_14 = arith.constant 0 : index
    %29 = vector.load %arg2[%c0_13, %28, %c0_14] : memref<1x256x16xbf16, #tpu.memory_space<vmem>>, vector<1x256x16xbf16>
    %30 = vector.shape_cast %29 : vector<1x256x16xbf16> to vector<256x16xbf16>
    %31 = arith.extf %30 : vector<256x16xbf16> to vector<256x16xf32>
    %c0_15 = arith.constant 0 : index
    %c0_16 = arith.constant 0 : index
    %32 = memref.load %arg7[%c0_15, %c0_16] : memref<1x1xf32, #tpu.memory_space<smem>>
    %33 = vector.broadcast %32 : f32 to vector<256x16xf32>
    %34 = arith.mulf %33, %27 : vector<256x16xf32>
    %35 = arith.addf %31, %34 : vector<256x16xf32>
    %c0_17 = arith.constant 0 : index
    %c0_18 = arith.constant 0 : index
    %c0_19 = arith.constant 0 : index
    %36 = vector.load %arg8[%c0_17, %c0_18, %c0_19] : memref<1x256x16xf32, #tpu.memory_space<vmem>>, vector<1x256x16xf32>
    %37 = vector.shape_cast %36 : vector<1x256x16xf32> to vector<256x16xf32>
    %38 = vector.shape_cast %35 : vector<256x16xf32> to vector<1x256x16xf32>
    tpu.vector_store %arg8[%c0_17, %c0_18, %c0_19], %38 {strides = array<i32>} : memref<1x256x16xf32, #tpu.memory_space<vmem>>, vector<1x256x16xf32>,
    return
  }
  func.func @transform_0(%arg0: i32, %arg1: i32) -> (i32, i32, i32) {
    %c0_i32 = arith.constant 0 : i32
    %c0_i32_0 = arith.constant 0 : i32
    %c0_i32_1 = arith.constant 0 : i32
    return %arg0, %c0_i32, %c0_i32_0 : i32, i32, i32
  }
  func.func @transform_1(%arg0: i32, %arg1: i32) -> (i32, i32) {
    %c0_i32 = arith.constant 0 : i32
    %c0_i32_0 = arith.constant 0 : i32
    %c0_i32_1 = arith.constant 0 : i32
    return %c0_i32, %c0_i32_0 : i32, i32
  }
  func.func @transform_2(%arg0: i32, %arg1: i32) -> (i32, i32) {
    %c0_i32 = arith.constant 0 : i32
    %c0_i32_0 = arith.constant 0 : i32
    %c0_i32_1 = arith.constant 0 : i32
    return %c0_i32, %c0_i32_0 : i32, i32
  }
  func.func @transform_3(%arg0: i32, %arg1: i32) -> (i32, i32) {
    %c0_i32 = arith.constant 0 : i32
    %c0_i32_0 = arith.constant 0 : i32
    %c0_i32_1 = arith.constant 0 : i32
    return %c0_i32, %c0_i32_0 : i32, i32
  }
  func.func @transform_4(%arg0: i32, %arg1: i32) -> (i32, i32) {
    %c0_i32 = arith.constant 0 : i32
    %c0_i32_0 = arith.constant 0 : i32
    %c0_i32_1 = arith.constant 0 : i32
    return %c0_i32, %c0_i32_0 : i32, i32
  }
  func.func @transform_5(%arg0: i32, %arg1: i32) -> (i32, i32) {
    %c0_i32 = arith.constant 0 : i32
    %c0_i32_0 = arith.constant 0 : i32
    %c0_i32_1 = arith.constant 0 : i32
    return %c0_i32, %c0_i32_0 : i32, i32
  }
  func.func @transform_6(%arg0: i32, %arg1: i32) -> (i32, i32, i32) {
    %c0_i32 = arith.constant 0 : i32
    %c0_i32_0 = arith.constant 0 : i32
    return %arg0, %arg1, %c0_i32 : i32, i32, i32
  }
}

</mosaic_0001>

<llo_original>
// kernel: _lambda_.1
$region0: #{_lambda_.1}
  #allocation0 [shape = 'u32[]', space=smem, size = 0x4, offset = 0x4, fixed_abs, tag = 'smem constant byte address 0x4 - core index']
  #allocation1 [shape = 'u32[144,128]{1,0:T(1,128)}', space=vmem, size = 0x12000, scoped, tag = 'internal scratch']
  #allocation2 [shape = 'bf16[256,2]{1,0:T(16,128)(2,1)}', space=vmem, size = 0x10000, scoped, tag = 'scratch operand']
  #allocation3 [shape = 'bf16[64,2]{1,0:T(16,128)(2,1)}', space=vmem, size = 0x4000, scoped, tag = 'scratch operand']
  #allocation4 [shape = 'bf16[64,8]{1,0:T(16,128)(2,1)}', space=vmem, size = 0x4000, scoped, tag = 'scratch operand']
  #allocation5 [shape = 'f32[1,1]{1,0:T(1,128)S(6)}', space=smem, size = 0x200, scoped, tag = 'scoped memory for _lambda_.1']
  %s0 = inlined_call_operand.vmem [shape: bf16[2,256,16], index: 0, kind: input, shape index: {}]
  %s1 = inlined_call_operand.vmem [shape: bf16[16,12], index: 1, kind: input, shape index: {}]
  %s2 = inlined_call_operand.vmem [shape: f32[1,12], index: 2, kind: input, shape index: {}]
  %s3 = inlined_call_operand.vmem [shape: bf16[8,16], index: 3, kind: input, shape index: {}]
  %s4 = inlined_call_operand.vmem [shape: f32[1,16], index: 4, kind: input, shape index: {}]
  %s5 = inlined_call_operand.<no memory space> [shape: f32[1,1], index: 5, kind: input, shape index: {}]
  %s6 = inlined_call_operand.vmem [shape: f32[2,256,16], index: 6, kind: output, shape index: {}]
  %s7 = sld [smem:[#allocation0]]
  $region61: #{_lambda_.1} parent=0
    _
  %s9 = ssub.s32 1, %s7
  %s10 = scalar_select 0, %s9, %s7
  %11 = sst [smem:[#allocation5]] %s5
  loop: start=0, step=1, limit=4
  $region2: #{_lambda_.1} parent=0 // loop_pre_header
    _
  $region3: #{_lambda_.1} parent=0 // loop_header
    %s13 = sphi 0, %s17
    %p14 = scmp.ge.s32.totalorder %s13, 4
    %s20 = sphi 0, %s32
    %s21 = sphi 0, %s28
    %s22 = sphi 0, %s20
    %s23 = sphi 0, %s21
    %s24 = sphi 0, %s22
    %s25 = sphi 0, %s23
    %s35 = sphi 0, %s37
    %s38 = sphi 0, %s35
    %s39 = sphi 0, %s38
    %s55 = sphi 0, %s39
    %s59 = sphi 0, %s59
    %s61 = sphi 0, %s59
    %s62 = sphi 0, %s61
    %s76 = sphi 0, %s62
    %s80 = sphi 0, %s80
    %s82 = sphi 0, %s80
    %s83 = sphi 0, %s82
    %s97 = sphi 0, %s83
    %s101 = sphi 0, %s101
    %s103 = sphi 0, %s101
    %s104 = sphi 0, %s103
    %s118 = sphi 0, %s104
    %s122 = sphi 0, %s122
    %s124 = sphi 0, %s122
    %s125 = sphi 0, %s124
    %s139 = sphi 0, %s125
    %s143 = sphi 0, %s143
    %s145 = sphi 0, %s143
    %s146 = sphi 0, %s145
    %s160 = sphi 0, %s146
    %s168 = sphi 0, %s170
    %s171 = sphi 0, %s168
    %s172 = sphi 0, %s171
    %s188 = sphi 0, %s172
  $region4: #{_lambda_.1} parent=0 // loop_header_branch
    %16 = sbr.rel (%p14) target = $region8
  $region5: #{_lambda_.1} parent=0 // loop_body
    %s18 = ssub.s32 %s13, 1
    %s19 = ssub.s32 %s13, 2
    %s26 = sadd.s32 1, %s21
    %p27 = scmp.ge.s32.totalorder %s26, 1
    %s28 = scalar_select %p27, 0, %s26
    %s29 = sadd.s32 1, %s20
    %s30 = scalar_select %p27, %s29, %s20
    %p31 = scmp.ge.s32.totalorder %s30, 2
    %s32 = scalar_select %p31, 0, %s30
    %s33 = ssub.s32 %s20, %s32
    %p34 = scmp.eq.s32.totalorder %s33, 0
    %s36 = sadd.s32 %s35, 1
    %s37 = scalar_select %p34, %s35, %s36
    %p40 = pneg %p34
    %p41 = scmp.eq.s32.totalorder %s13, 1
    %p42 = por %p40, %p41
    %p43 = scmp.ne.s32.totalorder %s35, %s38
    %p44 = scmp.eq.s32.totalorder %s13, 0
    %p45 = por %p43, %p44
    %p46 = scmp.ne.s32.totalorder %s35, %s38
    %p47 = scmp.eq.s32.totalorder %s18, 1
    %p48 = por %p46, %p47
    %p49 = scmp.ne.s32.totalorder %s38, %s39
    %p50 = scmp.eq.s32.totalorder %s18, 0
    %p51 = por %p49, %p50
    %p52 = scmp.ne.s32.totalorder %s38, %s39
    %p53 = scmp.eq.s32.totalorder %s19, 1
    %p54 = por %p52, %p53
    %p56 = scmp.ne.s32.totalorder %s39, %s55
    %p57 = scmp.eq.s32.totalorder %s19, 0
    %p58 = por %p56, %p57
    %s60 = sadd.s32 %s59, 1
    %p63 = scmp.eq.s32.totalorder %s13, 1
    %p64 = scmp.ne.s32.totalorder %s59, %s61
    %p65 = scmp.eq.s32.totalorder %s13, 0
    %p66 = por %p64, %p65
    %p67 = scmp.ne.s32.totalorder %s59, %s61
    %p68 = scmp.eq.s32.totalorder %s18, 1
    %p69 = por %p67, %p68
    %p70 = scmp.ne.s32.totalorder %s61, %s62
    %p71 = scmp.eq.s32.totalorder %s18, 0
    %p72 = por %p70, %p71
    %p73 = scmp.ne.s32.totalorder %s61, %s62
    %p74 = scmp.eq.s32.totalorder %s19, 1
    %p75 = por %p73, %p74
    %p77 = scmp.ne.s32.totalorder %s62, %s76
    %p78 = scmp.eq.s32.totalorder %s19, 0
    %p79 = por %p77, %p78
    %s81 = sadd.s32 %s80, 1
    %p84 = scmp.eq.s32.totalorder %s13, 1
    %p85 = scmp.ne.s32.totalorder %s80, %s82
    %p86 = scmp.eq.s32.totalorder %s13, 0
    %p87 = por %p85, %p86
    %p88 = scmp.ne.s32.totalorder %s80, %s82
    %p89 = scmp.eq.s32.totalorder %s18, 1
    %p90 = por %p88, %p89
    %p91 = scmp.ne.s32.totalorder %s82, %s83
    %p92 = scmp.eq.s32.totalorder %s18, 0
    %p93 = por %p91, %p92
    %p94 = scmp.ne.s32.totalorder %s82, %s83
    %p95 = scmp.eq.s32.totalorder %s19, 1
    %p96 = por %p94, %p95
    %p98 = scmp.ne.s32.totalorder %s83, %s97
    %p99 = scmp.eq.s32.totalorder %s19, 0
    %p100 = por %p98, %p99
    %s102 = sadd.s32 %s101, 1
    %p105 = scmp.eq.s32.totalorder %s13, 1
    %p106 = scmp.ne.s32.totalorder %s101, %s103
    %p107 = scmp.eq.s32.totalorder %s13, 0
    %p108 = por %p106, %p107
    %p109 = scmp.ne.s32.totalorder %s101, %s103
    %p110 = scmp.eq.s32.totalorder %s18, 1
    %p111 = por %p109, %p110
    %p112 = scmp.ne.s32.totalorder %s103, %s104
    %p113 = scmp.eq.s32.totalorder %s18, 0
    %p114 = por %p112, %p113
    %p115 = scmp.ne.s32.totalorder %s103, %s104
    %p116 = scmp.eq.s32.totalorder %s19, 1
    %p117 = por %p115, %p116
    %p119 = scmp.ne.s32.totalorder %s104, %s118
    %p120 = scmp.eq.s32.totalorder %s19, 0
    %p121 = por %p119, %p120
    %s123 = sadd.s32 %s122, 1
    %p126 = scmp.eq.s32.totalorder %s13, 1
    %p127 = scmp.ne.s32.totalorder %s122, %s124
    %p128 = scmp.eq.s32.totalorder %s13, 0
    %p129 = por %p127, %p128
    %p130 = scmp.ne.s32.totalorder %s122, %s124
    %p131 = scmp.eq.s32.totalorder %s18, 1
    %p132 = por %p130, %p131
    %p133 = scmp.ne.s32.totalorder %s124, %s125
    %p134 = scmp.eq.s32.totalorder %s18, 0
    %p135 = por %p133, %p134
    %p136 = scmp.ne.s32.totalorder %s124, %s125
    %p137 = scmp.eq.s32.totalorder %s19, 1
    %p138 = por %p136, %p137
    %p140 = scmp.ne.s32.totalorder %s125, %s139
    %p141 = scmp.eq.s32.totalorder %s19, 0
    %p142 = por %p140, %p141
    %s144 = sadd.s32 %s143, 1
    %p147 = scmp.eq.s32.totalorder %s13, 1
    %p148 = scmp.ne.s32.totalorder %s143, %s145
    %p149 = scmp.eq.s32.totalorder %s13, 0
    %p150 = por %p148, %p149
    %p151 = scmp.ne.s32.totalorder %s143, %s145
    %p152 = scmp.eq.s32.totalorder %s18, 1
    %p153 = por %p151, %p152
    %p154 = scmp.ne.s32.totalorder %s145, %s146
    %p155 = scmp.eq.s32.totalorder %s18, 0
    %p156 = por %p154, %p155
    %p157 = scmp.ne.s32.totalorder %s145, %s146
    %p158 = scmp.eq.s32.totalorder %s19, 1
    %p159 = por %p157, %p158
    %p161 = scmp.ne.s32.totalorder %s146, %s160
    %p162 = scmp.eq.s32.totalorder %s19, 0
    %p163 = por %p161, %p162
    %s164 = ssub.s32 %s20, %s32
    %s165 = ssub.s32 %s21, %s28
    %s166 = sor.u32 %s164, %s165
    %p167 = scmp.eq.s32.totalorder %s166, 0
    %s169 = sadd.s32 %s168, 1
    %s170 = scalar_select %p167, %s168, %s169
    %p173 = pneg %p167
    %p174 = scmp.eq.s32.totalorder %s13, 1
    %p175 = por %p173, %p174
    %p176 = scmp.ne.s32.totalorder %s168, %s171
    %p177 = scmp.eq.s32.totalorder %s13, 0
    %p178 = por %p176, %p177
    %p179 = scmp.ne.s32.totalorder %s168, %s171
    %p180 = scmp.eq.s32.totalorder %s18, 1
    %p181 = por %p179, %p180
    %p182 = scmp.ne.s32.totalorder %s171, %s172
    %p183 = scmp.eq.s32.totalorder %s18, 0
    %p184 = por %p182, %p183
    %p185 = scmp.ne.s32.totalorder %s171, %s172
    %p186 = scmp.eq.s32.totalorder %s19, 1
    %p187 = por %p185, %p186
    %p189 = scmp.ne.s32.totalorder %s172, %s188
    %p190 = scmp.eq.s32.totalorder %s19, 0
    %p191 = por %p189, %p190
    %p192 = scmp.le.s32.totalorder 1, %s13
    %p193 = scmp.lt.s32.totalorder %s13, 3
    %p194 = pnand %p192, %p193
    %p195 = pneg %p194
    // Predicated region
    $region9: #{_lambda_.1} parent=5 // pred_check
      _
    $region10: #{_lambda_.1} parent=5 // pred_check_branch
      %197 = sbr.rel (%p194) target = $region12
    $region11: #{_lambda_.1} parent=5 // pred_region
      %s198 = ssub.s32 %s13, 1
      // Predicated region
      $region13: #{_lambda_.1} parent=11 // pred_check
        %p199 = pneg %p72
      $region14: #{_lambda_.1} parent=11 // pred_check_branch
        %201 = sbr.rel (%p199) target = $region16
      $region15: #{_lambda_.1} parent=11 // pred_region
        _
      $region16: #{_lambda_.1} parent=11 // pred_fallthru
        _
      // Predicated region
      $region17: #{_lambda_.1} parent=11 // pred_check
        %p202 = pneg %p93
      $region18: #{_lambda_.1} parent=11 // pred_check_branch
        %204 = sbr.rel (%p202) target = $region20
      $region19: #{_lambda_.1} parent=11 // pred_region
        _
      $region20: #{_lambda_.1} parent=11 // pred_fallthru
        _
      // Predicated region
      $region21: #{_lambda_.1} parent=11 // pred_check
        %p205 = pneg %p114
      $region22: #{_lambda_.1} parent=11 // pred_check_branch
        %207 = sbr.rel (%p205) target = $region24
      $region23: #{_lambda_.1} parent=11 // pred_region
        _
      $region24: #{_lambda_.1} parent=11 // pred_fallthru
        _
      // Predicated region
      $region25: #{_lambda_.1} parent=11 // pred_check
        %p208 = pneg %p135
      $region26: #{_lambda_.1} parent=11 // pred_check_branch
        %210 = sbr.rel (%p208) target = $region28
      $region27: #{_lambda_.1} parent=11 // pred_region
        _
      $region28: #{_lambda_.1} parent=11 // pred_fallthru
        _
      // Predicated region
      $region29: #{_lambda_.1} parent=11 // pred_check
        %p211 = pneg %p156
      $region30: #{_lambda_.1} parent=11 // pred_check_branch
        %213 = sbr.rel (%p211) target = $region32
      $region31: #{_lambda_.1} parent=11 // pred_region
        _
      $region32: #{_lambda_.1} parent=11 // pred_fallthru
        _
    $region12: #{_lambda_.1} parent=5 // pred_fallthru
      _
    %p214 = scmp.lt.s32.totalorder %s13, 2
    // Predicated region
    $region33: #{_lambda_.1} parent=5 // pred_check
      %p215 = pneg %p214
    $region34: #{_lambda_.1} parent=5 // pred_check_branch
      %217 = sbr.rel (%p215) target = $region36
    $region35: #{_lambda_.1} parent=5 // pred_region
      // Predicated region
      $region37: #{_lambda_.1} parent=35 // pred_check
        %p218 = pneg %p45
      $region38: #{_lambda_.1} parent=35 // pred_check_branch
        %220 = sbr.rel (%p218) target = $region40
      $region39: #{_lambda_.1} parent=35 // pred_region
        %p221 = scmp.lt.s32.totalorder %s20, 1
        %s222 = scalar_select %p221, %s20, 1
        %s223 = smul.addr %s222, 32
        %s224 = smul.addr %s223, 4
        %s225 = scalar_lea.vmem %s0, %s224
      $region40: #{_lambda_.1} parent=35 // pred_fallthru
        _
    $region36: #{_lambda_.1} parent=5 // pred_fallthru
      _
    %p226 = scmp.le.s32.totalorder 1, %s13
    %p227 = scmp.lt.s32.totalorder %s13, 3
    %p228 = pnand %p226, %p227
    %p229 = pneg %p228
    // Predicated region
    $region41: #{_lambda_.1} parent=5 // pred_check
      _
    $region42: #{_lambda_.1} parent=5 // pred_check_branch
      %231 = sbr.rel (%p228) target = $region44
    $region43: #{_lambda_.1} parent=5 // pred_region
      %s232 = ssub.s32 %s13, 1
      %p233 = scmp.lt.s32.totalorder %s22, 1
      %s234 = scalar_select %p233, %s22, 1
      %s235 = smul.addr %s234, 32
      %s236 = smul.addr %s235, 4
      %s237 = scalar_lea.vmem %s0, %s236
      %p238 = pneg %p51
      %p239 = pneg %p48
      %p240 = pneg %p72
      %p241 = pneg %p69
      %p242 = pneg %p93
      %p243 = pneg %p90
      %p244 = pneg %p114
      %p245 = pneg %p111
      %p246 = pneg %p135
      %p247 = pneg %p132
      %p248 = pneg %p156
      %p249 = pneg %p153
      %p250 = pneg %p184
      %p251 = pneg %p181
      %s252 = smul.u32 32, %s23
      %p253 = scmp.lt.s32.totalorder %s22, 1
      %s254 = scalar_select %p253, %s22, 1
      %p255 = scmp.lt.s32.totalorder %s252, 31
      %s256 = scalar_select %p255, %s252, 31
      %s257 = smul.addr %s254, 32
      %s258 = sadd.s32 %s256, %s257
      %s259 = smul.addr %s258, 8
      %s260 = scalar_lea.vmem %s6, %s259
      %p261 = scmp.lt.s32.totalorder %s22, 1
      %s262 = scalar_select %p261, %s22, 1
      %s263 = smul.addr %s262, 32
      %s264 = smul.addr %s263, 4
      %s265 = scalar_lea.vmem %s0, %s264
      %s266 = smul.u32 32, %s23
      %p267 = scmp.lt.s32.totalorder %s22, 1
      %s268 = scalar_select %p267, %s22, 1
      %p269 = scmp.lt.s32.totalorder %s266, 31
      %s270 = scalar_select %p269, %s266, 31
      %s271 = smul.addr %s268, 32
      %s272 = sadd.s32 %s270, %s271
      %s273 = smul.addr %s272, 8
      %s274 = scalar_lea.vmem %s6, %s273
      %s275 = smul.u32 32, %s23
      %p277 = scmp.eq.s32.totalorder %s23, 0
      // Predicated region
      $region45: #{_lambda_.1} parent=43 // pred_check
        %p278 = pneg %p277
      $region46: #{_lambda_.1} parent=43 // pred_check_branch
        %280 = sbr.rel (%p278) target = $region48
      $region47: #{_lambda_.1} parent=43 // pred_region
        %v281 = vld [vmem:[%s265] sm:$0xf]
        %v282 = vld [vmem:[%s265 + $0x4] sm:$0xf]
        %v283 = vld [vmem:[%s265 + $0x8] sm:$0xf]
        %v284 = vld [vmem:[%s265 + $0xc] sm:$0xf]
        %v285 = vld [vmem:[%s265 + $0x10] sm:$0xf]
        %v286 = vld [vmem:[%s265 + $0x14] sm:$0xf]
        %v287 = vld [vmem:[%s265 + $0x18] sm:$0xf]
        %v288 = vld [vmem:[%s265 + $0x1c] sm:$0xf]
        %v289 = vld [vmem:[%s265 + $0x20] sm:$0xf]
        %v290 = vld [vmem:[%s265 + $0x24] sm:$0xf]
        %v291 = vld [vmem:[%s265 + $0x28] sm:$0xf]
        %v292 = vld [vmem:[%s265 + $0x2c] sm:$0xf]
        %v293 = vld [vmem:[%s265 + $0x30] sm:$0xf]
        %v294 = vld [vmem:[%s265 + $0x34] sm:$0xf]
        %v295 = vld [vmem:[%s265 + $0x38] sm:$0xf]
        %v296 = vld [vmem:[%s265 + $0x3c] sm:$0xf]
        %v297 = vld [vmem:[%s265 + $0x40] sm:$0xf]
        %v298 = vld [vmem:[%s265 + $0x44] sm:$0xf]
        %v299 = vld [vmem:[%s265 + $0x48] sm:$0xf]
        %v300 = vld [vmem:[%s265 + $0x4c] sm:$0xf]
        %v301 = vld [vmem:[%s265 + $0x50] sm:$0xf]
        %v302 = vld [vmem:[%s265 + $0x54] sm:$0xf]
        %v303 = vld [vmem:[%s265 + $0x58] sm:$0xf]
        %v304 = vld [vmem:[%s265 + $0x5c] sm:$0xf]
        %v305 = vld [vmem:[%s265 + $0x60] sm:$0xf]
        %v306 = vld [vmem:[%s265 + $0x64] sm:$0xf]
        %v307 = vld [vmem:[%s265 + $0x68] sm:$0xf]
        %v308 = vld [vmem:[%s265 + $0x6c] sm:$0xf]
        %v309 = vld [vmem:[%s265 + $0x70] sm:$0xf]
        %v310 = vld [vmem:[%s265 + $0x74] sm:$0xf]
        %v311 = vld [vmem:[%s265 + $0x78] sm:$0xf]
        %v312 = vld [vmem:[%s265 + $0x7c] sm:$0xf]
        %v313 = vld [vmem:[%s1] sm:$0xf]
        %v314 = vld [vmem:[%s1 + $0x4] sm:$0xf]
        %v315 = vld [vmem:[%s2] sm:$0x1]
        %v317 = vlaneseq
        %v318 = vshrl.u32 %v317, 7
        %v319 = vsub.s32 0, %v318
        %v320 = vrot.slane %v315, %v319
        %v354 = vunpack.c.l.b16 %v281
        %v355 = vunpack.c.l.b16 %v282
        %v356 = vunpack.c.l.b16 %v283
        %v357 = vunpack.c.l.b16 %v284
        %v358 = vunpack.c.l.b16 %v285
        %v359 = vunpack.c.l.b16 %v286
        %v360 = vunpack.c.l.b16 %v287
        %v361 = vunpack.c.l.b16 %v288
        %v362 = vunpack.c.l.b16 %v289
        %v363 = vunpack.c.l.b16 %v290
        %v364 = vunpack.c.l.b16 %v291
        %v365 = vunpack.c.l.b16 %v292
        %v366 = vunpack.c.l.b16 %v293
        %v367 = vunpack.c.l.b16 %v294
        %v368 = vunpack.c.l.b16 %v295
        %v369 = vunpack.c.l.b16 %v296
        %v370 = vunpack.c.l.b16 %v297
        %v371 = vunpack.c.l.b16 %v298
        %v372 = vunpack.c.l.b16 %v299
        %v373 = vunpack.c.l.b16 %v300
        %v374 = vunpack.c.l.b16 %v301
        %v375 = vunpack.c.l.b16 %v302
        %v376 = vunpack.c.l.b16 %v303
        %v377 = vunpack.c.l.b16 %v304
        %v378 = vunpack.c.l.b16 %v305
        %v379 = vunpack.c.l.b16 %v306
        %v380 = vunpack.c.l.b16 %v307
        %v381 = vunpack.c.l.b16 %v308
        %v382 = vunpack.c.l.b16 %v309
        %v383 = vunpack.c.l.b16 %v310
        %v384 = vunpack.c.l.b16 %v311
        %v385 = vunpack.c.l.b16 %v312
        %v386 = vpack.c.b16 %v355, %v354
        %v387 = vpack.c.b16 %v357, %v356
        %v388 = vpack.c.b16 %v359, %v358
        %v389 = vpack.c.b16 %v361, %v360
        %v390 = vpack.c.b16 %v363, %v362
        %v391 = vpack.c.b16 %v365, %v364
        %v392 = vpack.c.b16 %v367, %v366
        %v393 = vpack.c.b16 %v369, %v368
        %v394 = vpack.c.b16 %v371, %v370
        %v395 = vpack.c.b16 %v373, %v372
        %v396 = vpack.c.b16 %v375, %v374
        %v397 = vpack.c.b16 %v377, %v376
        %v398 = vpack.c.b16 %v379, %v378
        %v399 = vpack.c.b16 %v381, %v380
        %v400 = vpack.c.b16 %v383, %v382
        %v401 = vpack.c.b16 %v385, %v384
        %v404 = vunpack.c.l.b16 %v313
        %v405 = vunpack.c.l.b16 %v314
        %v406 = vpack.c.b16 %v405, %v404
        %vm408 = vcmask 130048
        %v410 = vsel %vm408, %v386, 0
        %v413 = vsel %vm408, %v387, 0
        %v416 = vsel %vm408, %v388, 0
        %v419 = vsel %vm408, %v389, 0
        %v422 = vsel %vm408, %v390, 0
        %v425 = vsel %vm408, %v391, 0
        %v428 = vsel %vm408, %v392, 0
        %v431 = vsel %vm408, %v393, 0
        %v434 = vsel %vm408, %v394, 0
        %v437 = vsel %vm408, %v395, 0
        %v440 = vsel %vm408, %v396, 0
        %v443 = vsel %vm408, %v397, 0
        %v446 = vsel %vm408, %v398, 0
        %v449 = vsel %vm408, %v399, 0
        %v452 = vsel %vm408, %v400, 0
        %v455 = vsel %vm408, %v401, 0
        %457 = vmatprep.subr.bf16.mxu0 0
        %458 = vmatpush1.bf16.msra.mxu0 %v406
        %459 = vmatprep.subr.bf16.mxu0 0
        %460 = vmatpush1.bf16.msra.mxu0 0
        %461 = vmatprep.subr.bf16.mxu0 0
        %462 = vmatpush1.bf16.msra.mxu0 0
        %463 = vmatprep.subr.bf16.mxu0 0
        %464 = vmatpush1.bf16.msra.mxu0 0
        %465 = vmatprep.subr.bf16.mxu0 0
        %466 = vmatpush1.bf16.msra.mxu0 0
        %467 = vmatprep.subr.bf16.mxu0 0
        %468 = vmatpush1.bf16.msra.mxu0 0
        %469 = vmatprep.subr.bf16.mxu0 0
        %470 = vmatpush1.bf16.msra.mxu0 0
        %471 = vmatprep.subr.bf16.mxu0 0
        %472 = vmatpush1.bf16.msra.mxu0 0
        %473 = vmatprep.subr.bf16.mxu0 0
        %474 = vmatpush1.bf16.msra.mxu0 0
        %475 = vmatprep.subr.bf16.mxu0 0
        %476 = vmatpush1.bf16.msra.mxu0 0
        %477 = vmatprep.subr.bf16.mxu0 0
        %478 = vmatpush1.bf16.msra.mxu0 0
        %479 = vmatprep.subr.bf16.mxu0 0
        %480 = vmatpush1.bf16.msra.mxu0 0
        %481 = vmatprep.subr.bf16.mxu0 0
        %482 = vmatpush1.bf16.msra.mxu0 0
        %483 = vmatprep.subr.bf16.mxu0 0
        %484 = vmatpush1.bf16.msra.mxu0 0
        %485 = vmatprep.subr.bf16.mxu0 0
        %486 = vmatpush1.bf16.msra.mxu0 0
        %487 = vmatprep.subr.bf16.mxu0 0
        %488 = vmatpush1.bf16.msra.mxu0 0
        %489 = vmatprep.mubr.bf16.mxu0 0
        %490 = vmatmul.mubr.bf16.gmra.mrb[0].mxu0 %v410
        %v491 = vpop.f32.mrb[0].mxu0
        %v492 = vadd.f32 %v320, %v491
        %v493 = vpop.f32.mrb[0].mxu0
        %v494 = vpop.f32.mrb[0].mxu0
        %v495 = vadd.f32 %v320, %v494
        %v496 = vpop.f32.mrb[0].mxu0
        %497 = vmatprep.mubr.bf16.mxu0 0
        %498 = vmatmul.mubr.bf16.gmra.mrb[0].mxu0 %v413
        %v499 = vpop.f32.mrb[0].mxu0
        %v500 = vadd.f32 %v320, %v499
        %v501 = vpop.f32.mrb[0].mxu0
        %v502 = vpop.f32.mrb[0].mxu0
        %v503 = vadd.f32 %v320, %v502
        %v504 = vpop.f32.mrb[0].mxu0
        %505 = vmatprep.mubr.bf16.mxu0 0
        %506 = vmatmul.mubr.bf16.gmra.mrb[0].mxu0 %v416
        %v507 = vpop.f32.mrb[0].mxu0
        %v508 = vadd.f32 %v320, %v507
        %v509 = vpop.f32.mrb[0].mxu0
        %v510 = vpop.f32.mrb[0].mxu0
        %v511 = vadd.f32 %v320, %v510
        %v512 = vpop.f32.mrb[0].mxu0
        %513 = vmatprep.mubr.bf16.mxu0 0
        %514 = vmatmul.mubr.bf16.gmra.mrb[0].mxu0 %v419
        %v515 = vpop.f32.mrb[0].mxu0
        %v516 = vadd.f32 %v320, %v515
        %v517 = vpop.f32.mrb[0].mxu0
        %v518 = vpop.f32.mrb[0].mxu0
        %v519 = vadd.f32 %v320, %v518
        %v520 = vpop.f32.mrb[0].mxu0
        %521 = vmatprep.mubr.bf16.mxu0 0
        %522 = vmatmul.mubr.bf16.gmra.mrb[0].mxu0 %v422
        %v523 = vpop.f32.mrb[0].mxu0
        %v524 = vadd.f32 %v320, %v523
        %v525 = vpop.f32.mrb[0].mxu0
        %v526 = vpop.f32.mrb[0].mxu0
        %v527 = vadd.f32 %v320, %v526
        %v528 = vpop.f32.mrb[0].mxu0
        %529 = vmatprep.mubr.bf16.mxu0 0
        %530 = vmatmul.mubr.bf16.gmra.mrb[0].mxu0 %v425
        %v531 = vpop.f32.mrb[0].mxu0
        %v532 = vadd.f32 %v320, %v531
        %v533 = vpop.f32.mrb[0].mxu0
        %v534 = vpop.f32.mrb[0].mxu0
        %v535 = vadd.f32 %v320, %v534
        %v536 = vpop.f32.mrb[0].mxu0
        %537 = vmatprep.mubr.bf16.mxu0 0
        %538 = vmatmul.mubr.bf16.gmra.mrb[0].mxu0 %v428
        %v539 = vpop.f32.mrb[0].mxu0
        %v540 = vadd.f32 %v320, %v539
        %v541 = vpop.f32.mrb[0].mxu0
        %v542 = vpop.f32.mrb[0].mxu0
        %v543 = vadd.f32 %v320, %v542
        %v544 = vpop.f32.mrb[0].mxu0
        %545 = vmatprep.mubr.bf16.mxu0 0
        %546 = vmatmul.mubr.bf16.gmra.mrb[0].mxu0 %v431
        %v547 = vpop.f32.mrb[0].mxu0
        %v548 = vadd.f32 %v320, %v547
        %v549 = vpop.f32.mrb[0].mxu0
        %v550 = vpop.f32.mrb[0].mxu0
        %v551 = vadd.f32 %v320, %v550
        %v552 = vpop.f32.mrb[0].mxu0
        %553 = vmatprep.mubr.bf16.mxu0 0
        %554 = vmatmul.mubr.bf16.gmra.mrb[0].mxu0 %v434
        %v555 = vpop.f32.mrb[0].mxu0
        %v556 = vadd.f32 %v320, %v555
        %v557 = vpop.f32.mrb[0].mxu0
        %v558 = vpop.f32.mrb[0].mxu0
        %v559 = vadd.f32 %v320, %v558
        %v560 = vpop.f32.mrb[0].mxu0
        %561 = vmatprep.mubr.bf16.mxu0 0
        %562 = vmatmul.mubr.bf16.gmra.mrb[0].mxu0 %v437
        %v563 = vpop.f32.mrb[0].mxu0
        %v564 = vadd.f32 %v320, %v563
        %v565 = vpop.f32.mrb[0].mxu0
        %v566 = vpop.f32.mrb[0].mxu0
        %v567 = vadd.f32 %v320, %v566
        %v568 = vpop.f32.mrb[0].mxu0
        %569 = vmatprep.mubr.bf16.mxu0 0
        %570 = vmatmul.mubr.bf16.gmra.mrb[0].mxu0 %v440
        %v571 = vpop.f32.mrb[0].mxu0
        %v572 = vadd.f32 %v320, %v571
        %v573 = vpop.f32.mrb[0].mxu0
        %v574 = vpop.f32.mrb[0].mxu0
        %v575 = vadd.f32 %v320, %v574
        %v576 = vpop.f32.mrb[0].mxu0
        %577 = vmatprep.mubr.bf16.mxu0 0
        %578 = vmatmul.mubr.bf16.gmra.mrb[0].mxu0 %v443
        %v579 = vpop.f32.mrb[0].mxu0
        %v580 = vadd.f32 %v320, %v579
        %v581 = vpop.f32.mrb[0].mxu0
        %v582 = vpop.f32.mrb[0].mxu0
        %v583 = vadd.f32 %v320, %v582
        %v584 = vpop.f32.mrb[0].mxu0
        %585 = vmatprep.mubr.bf16.mxu0 0
        %586 = vmatmul.mubr.bf16.gmra.mrb[0].mxu0 %v446
        %v587 = vpop.f32.mrb[0].mxu0
        %v588 = vadd.f32 %v320, %v587
        %v589 = vpop.f32.mrb[0].mxu0
        %v590 = vpop.f32.mrb[0].mxu0
        %v591 = vadd.f32 %v320, %v590
        %v592 = vpop.f32.mrb[0].mxu0
        %593 = vmatprep.mubr.bf16.mxu0 0
        %594 = vmatmul.mubr.bf16.gmra.mrb[0].mxu0 %v449
        %v595 = vpop.f32.mrb[0].mxu0
        %v596 = vadd.f32 %v320, %v595
        %v597 = vpop.f32.mrb[0].mxu0
        %v598 = vpop.f32.mrb[0].mxu0
        %v599 = vadd.f32 %v320, %v598
        %v600 = vpop.f32.mrb[0].mxu0
        %601 = vmatprep.mubr.bf16.mxu0 0
        %602 = vmatmul.mubr.bf16.gmra.mrb[0].mxu0 %v452
        %v603 = vpop.f32.mrb[0].mxu0
        %v604 = vadd.f32 %v320, %v603
        %v605 = vpop.f32.mrb[0].mxu0
        %v606 = vpop.f32.mrb[0].mxu0
        %v607 = vadd.f32 %v320, %v606
        %v608 = vpop.f32.mrb[0].mxu0
        %609 = vmatprep.mubr.bf16.mxu0 0
        %610 = vmatmul.mubr.bf16.gmra.mrb[0].mxu0 %v455
        %v611 = vpop.f32.mrb[0].mxu0
        %v612 = vadd.f32 %v320, %v611
        %v613 = vpop.f32.mrb[0].mxu0
        %v614 = vpop.f32.mrb[0].mxu0
        %v615 = vadd.f32 %v320, %v614
        %v616 = vpop.f32.mrb[0].mxu0
        %617 = vdwg.mxu0
        %v618 = vpack.c.bf16 %v495, %v492
        %v619 = vpack.c.bf16 %v503, %v500
        %v620 = vpack.c.bf16 %v511, %v508
        %v621 = vpack.c.bf16 %v519, %v516
        %v622 = vpack.c.bf16 %v527, %v524
        %v623 = vpack.c.bf16 %v535, %v532
        %v624 = vpack.c.bf16 %v543, %v540
        %v625 = vpack.c.bf16 %v551, %v548
        %v626 = vpack.c.bf16 %v559, %v556
        %v627 = vpack.c.bf16 %v567, %v564
        %v628 = vpack.c.bf16 %v575, %v572
        %v629 = vpack.c.bf16 %v583, %v580
        %v630 = vpack.c.bf16 %v591, %v588
        %v631 = vpack.c.bf16 %v599, %v596
        %v632 = vpack.c.bf16 %v607, %v604
        %v633 = vpack.c.bf16 %v615, %v612
        %vm634 = vcmask 15360
        %635 = vst.msk [vmem:[#allocation2] sm:$0xff] %vm634, %v618
        %636 = vst.msk [vmem:[#allocation2 + $0x8] sm:$0xff] %vm634, %v619
        %637 = vst.msk [vmem:[#allocation2 + $0x10] sm:$0xff] %vm634, %v620
        %638 = vst.msk [vmem:[#allocation2 + $0x18] sm:$0xff] %vm634, %v621
        %639 = vst.msk [vmem:[#allocation2 + $0x20] sm:$0xff] %vm634, %v622
        %640 = vst.msk [vmem:[#allocation2 + $0x28] sm:$0xff] %vm634, %v623
        %641 = vst.msk [vmem:[#allocation2 + $0x30] sm:$0xff] %vm634, %v624
        %642 = vst.msk [vmem:[#allocation2 + $0x38] sm:$0xff] %vm634, %v625
        %643 = vst.msk [vmem:[#allocation2 + $0x40] sm:$0xff] %vm634, %v626
        %644 = vst.msk [vmem:[#allocation2 + $0x48] sm:$0xff] %vm634, %v627
        %645 = vst.msk [vmem:[#allocation2 + $0x50] sm:$0xff] %vm634, %v628
        %646 = vst.msk [vmem:[#allocation2 + $0x58] sm:$0xff] %vm634, %v629
        %647 = vst.msk [vmem:[#allocation2 + $0x60] sm:$0xff] %vm634, %v630
        %648 = vst.msk [vmem:[#allocation2 + $0x68] sm:$0xff] %vm634, %v631
        %649 = vst.msk [vmem:[#allocation2 + $0x70] sm:$0xff] %vm634, %v632
        %650 = vst.msk [vmem:[#allocation2 + $0x78] sm:$0xff] %vm634, %v633
        %v651 = vmax.f32 %v492, %v524
        %v652 = vmax.f32 %v495, %v527
        %v653 = vmax.f32 %v500, %v532
        %v654 = vmax.f32 %v503, %v535
        %v655 = vmax.f32 %v508, %v540
        %v656 = vmax.f32 %v511, %v543
        %v657 = vmax.f32 %v516, %v548
        %v658 = vmax.f32 %v519, %v551
        %v659 = vmax.f32 %v556, %v588
        %v660 = vmax.f32 %v559, %v591
        %v661 = vmax.f32 %v564, %v596
        %v662 = vmax.f32 %v567, %v599
        %v663 = vmax.f32 %v572, %v604
        %v664 = vmax.f32 %v575, %v607
        %v665 = vmax.f32 %v580, %v612
        %v666 = vmax.f32 %v583, %v615
        %v667 = vmax.f32 %v651, %v659
        %v668 = vmax.f32 %v652, %v660
        %v669 = vmax.f32 %v653, %v661
        %v670 = vmax.f32 %v654, %v662
        %v671 = vmax.f32 %v655, %v663
        %v672 = vmax.f32 %v656, %v664
        %v673 = vmax.f32 %v657, %v665
        %v674 = vmax.f32 %v658, %v666
        %v675 = vpack.c.bf16 %v668, %v667
        %v676 = vpack.c.bf16 %v670, %v669
        %v677 = vpack.c.bf16 %v672, %v671
        %v678 = vpack.c.bf16 %v674, %v673
        %683 = vrot.lane.b32.xlu0 %v675, 126
        %v684 = vpop.permute.xlu0 %683
        %685 = vrot.lane.b32.xlu0 %v676, 126
        %v686 = vpop.permute.xlu0 %685
        %687 = vrot.lane.b32.xlu0 %v677, 126
        %v688 = vpop.permute.xlu0 %687
        %689 = vrot.lane.b32.xlu0 %v678, 126
        %v690 = vpop.permute.xlu0 %689
        %695 = vst.msk [vmem:[#allocation3] sm:$0xff] %vm634, %v684
        %696 = vst.msk [vmem:[#allocation3 + $0x8] sm:$0xff] %vm634, %v686
        %697 = vst.msk [vmem:[#allocation3 + $0x10] sm:$0xff] %vm634, %v688
        %698 = vst.msk [vmem:[#allocation3 + $0x18] sm:$0xff] %vm634, %v690
        %699 = vrot.lane.b32.xlu0 %v675, 124
        %v700 = vpop.permute.xlu0 %699
        %701 = vrot.lane.b32.xlu0 %v676, 124
        %v702 = vpop.permute.xlu0 %701
        %703 = vrot.lane.b32.xlu0 %v677, 124
        %v704 = vpop.permute.xlu0 %703
        %705 = vrot.lane.b32.xlu0 %v678, 124
        %v706 = vpop.permute.xlu0 %705
        %vm711 = vcmask 64512
        %712 = vst.msk [vmem:[#allocation4] sm:$0xff] %vm711, %v700
        %713 = vst.msk [vmem:[#allocation4 + $0x8] sm:$0xff] %vm711, %v702
        %714 = vst.msk [vmem:[#allocation4 + $0x10] sm:$0xff] %vm711, %v704
        %715 = vst.msk [vmem:[#allocation4 + $0x18] sm:$0xff] %vm711, %v706
      $region48: #{_lambda_.1} parent=43 // pred_fallthru
        _
      %s716 = smul.u32 %s23, 256
      %s717 = sshra.s32 %s716, 4
      %s718 = sand.u32 %s716, 15
      %s719 = smul.addr %s717, 8
      %s720 = scalar_lea.vmem [#allocation2], %s719
      %v721 = vld [vmem:[%s720] sm:$0xff]
      %v722 = vld [vmem:[%s720 + $0x8] sm:$0xff]
      %v723 = vld [vmem:[%s720 + $0x10] sm:$0xff]
      %v724 = vld [vmem:[%s720 + $0x18] sm:$0xff]
      %v725 = vld [vmem:[%s720 + $0x20] sm:$0xff]
      %v726 = vld [vmem:[%s720 + $0x28] sm:$0xff]
      %v727 = vld [vmem:[%s720 + $0x30] sm:$0xff]
      %v728 = vld [vmem:[%s720 + $0x38] sm:$0xff]
      %v729 = vld [vmem:[%s720 + $0x40] sm:$0xff]
      %v730 = vld [vmem:[%s720 + $0x48] sm:$0xff]
      %v731 = vld [vmem:[%s720 + $0x50] sm:$0xff]
      %v732 = vld [vmem:[%s720 + $0x58] sm:$0xff]
      %v733 = vld [vmem:[%s720 + $0x60] sm:$0xff]
      %v734 = vld [vmem:[%s720 + $0x68] sm:$0xff]
      %v735 = vld [vmem:[%s720 + $0x70] sm:$0xff]
      %v736 = vld [vmem:[%s720 + $0x78] sm:$0xff]
      %v737 = vld [vmem:[#allocation3] sm:$0xff]
      %v738 = vld [vmem:[#allocation3 + $0x8] sm:$0xff]
      %v739 = vld [vmem:[#allocation3 + $0x10] sm:$0xff]
      %v740 = vld [vmem:[#allocation3 + $0x18] sm:$0xff]
      %vm741 = vcmask 15360
      %v743 = vsel %vm741, %v721, 0
      %v746 = vsel %vm741, %v722, 0
      %v749 = vsel %vm741, %v723, 0
      %v752 = vsel %vm741, %v724, 0
      %v755 = vsel %vm741, %v725, 0
      %v758 = vsel %vm741, %v726, 0
      %v761 = vsel %vm741, %v727, 0
      %v764 = vsel %vm741, %v728, 0
      %v767 = vsel %vm741, %v729, 0
      %v770 = vsel %vm741, %v730, 0
      %v773 = vsel %vm741, %v731, 0
      %v776 = vsel %vm741, %v732, 0
      %v779 = vsel %vm741, %v733, 0
      %v782 = vsel %vm741, %v734, 0
      %v785 = vsel %vm741, %v735, 0
      %v788 = vsel %vm741, %v736, 0
      %v791 = vsel %vm741, %v737, 0
      %v794 = vsel %vm741, %v738, 0
      %v797 = vsel %vm741, %v739, 0
      %v800 = vsel %vm741, %v740, 0
      %802 = vmatprep.subr.bf16.mxu0 0
      %803 = vmatpush1.bf16.xpose.msra.mxu0 %v791
      %804 = vmatprep.subr.bf16.mxu0 0
      %805 = vmatpush1.bf16.xpose.msra.mxu0 %v794
      %806 = vmatprep.subr.bf16.mxu0 0
      %807 = vmatpush1.bf16.xpose.msra.mxu0 %v797
      %808 = vmatprep.subr.bf16.mxu0 0
      %809 = vmatpush1.bf16.xpose.msra.mxu0 %v800
      %810 = vmatprep.subr.bf16.mxu0 0
      %811 = vmatpush1.bf16.xpose.msra.mxu0 0
      %812 = vmatprep.subr.bf16.mxu0 0
      %813 = vmatpush1.bf16.xpose.msra.mxu0 0
      %814 = vmatprep.subr.bf16.mxu0 0
      %815 = vmatpush1.bf16.xpose.msra.mxu0 0
      %816 = vmatprep.subr.bf16.mxu0 0
      %817 = vmatpush1.bf16.xpose.msra.mxu0 0
      %818 = vmatprep.subr.bf16.mxu0 0
      %819 = vmatpush1.bf16.xpose.msra.mxu0 0
      %820 = vmatprep.subr.bf16.mxu0 0
      %821 = vmatpush1.bf16.xpose.msra.mxu0 0
      %822 = vmatprep.subr.bf16.mxu0 0
      %823 = vmatpush1.bf16.xpose.msra.mxu0 0
      %824 = vmatprep.subr.bf16.mxu0 0
      %825 = vmatpush1.bf16.xpose.msra.mxu0 0
      %826 = vmatprep.subr.bf16.mxu0 0
      %827 = vmatpush1.bf16.xpose.msra.mxu0 0
      %828 = vmatprep.subr.bf16.mxu0 0
      %829 = vmatpush1.bf16.xpose.msra.mxu0 0
      %830 = vmatprep.subr.bf16.mxu0 0
      %831 = vmatpush1.bf16.xpose.msra.mxu0 0
      %832 = vmatprep.subr.bf16.mxu0 0
      %833 = vmatpush1.bf16.xpose.msra.mxu0 0
      %834 = vmatprep.mubr.bf16.mxu0 0
      %835 = vmatmul.mubr.bf16.gmra.mrb[0].mxu0 %v743
      %v836 = vpop.f32.mrb[0].mxu0
      %v837 = vadd.f32 0.0, %v836
      %v838 = vpop.f32.mrb[0].mxu0
      %v839 = vpop.f32.mrb[0].mxu0
      %v840 = vadd.f32 0.0, %v839
      %v841 = vpop.f32.mrb[0].mxu0
      %842 = vmatprep.mubr.bf16.mxu0 0
      %843 = vmatmul.mubr.bf16.gmra.mrb[0].mxu0 %v746
      %v844 = vpop.f32.mrb[0].mxu0
      %v845 = vadd.f32 0.0, %v844
      %v846 = vpop.f32.mrb[0].mxu0
      %v847 = vpop.f32.mrb[0].mxu0
      %v848 = vadd.f32 0.0, %v847
      %v849 = vpop.f32.mrb[0].mxu0
      %850 = vmatprep.mubr.bf16.mxu0 0
      %851 = vmatmul.mubr.bf16.gmra.mrb[0].mxu0 %v749
      %v852 = vpop.f32.mrb[0].mxu0
      %v853 = vadd.f32 0.0, %v852
      %v854 = vpop.f32.mrb[0].mxu0
      %v855 = vpop.f32.mrb[0].mxu0
      %v856 = vadd.f32 0.0, %v855
      %v857 = vpop.f32.mrb[0].mxu0
      %858 = vmatprep.mubr.bf16.mxu0 0
      %859 = vmatmul.mubr.bf16.gmra.mrb[0].mxu0 %v752
      %v860 = vpop.f32.mrb[0].mxu0
      %v861 = vadd.f32 0.0, %v860
      %v862 = vpop.f32.mrb[0].mxu0
      %v863 = vpop.f32.mrb[0].mxu0
      %v864 = vadd.f32 0.0, %v863
      %v865 = vpop.f32.mrb[0].mxu0
      %866 = vmatprep.mubr.bf16.mxu0 0
      %867 = vmatmul.mubr.bf16.gmra.mrb[0].mxu0 %v755
      %v868 = vpop.f32.mrb[0].mxu0
      %v869 = vadd.f32 0.0, %v868
      %v870 = vpop.f32.mrb[0].mxu0
      %v871 = vpop.f32.mrb[0].mxu0
      %v872 = vadd.f32 0.0, %v871
      %v873 = vpop.f32.mrb[0].mxu0
      %874 = vmatprep.mubr.bf16.mxu0 0
      %875 = vmatmul.mubr.bf16.gmra.mrb[0].mxu0 %v758
      %v876 = vpop.f32.mrb[0].mxu0
      %v877 = vadd.f32 0.0, %v876
      %v878 = vpop.f32.mrb[0].mxu0
      %v879 = vpop.f32.mrb[0].mxu0
      %v880 = vadd.f32 0.0, %v879
      %v881 = vpop.f32.mrb[0].mxu0
      %882 = vmatprep.mubr.bf16.mxu0 0
      %883 = vmatmul.mubr.bf16.gmra.mrb[0].mxu0 %v761
      %v884 = vpop.f32.mrb[0].mxu0
      %v885 = vadd.f32 0.0, %v884
      %v886 = vpop.f32.mrb[0].mxu0
      %v887 = vpop.f32.mrb[0].mxu0
      %v888 = vadd.f32 0.0, %v887
      %v889 = vpop.f32.mrb[0].mxu0
      %890 = vmatprep.mubr.bf16.mxu0 0
      %891 = vmatmul.mubr.bf16.gmra.mrb[0].mxu0 %v764
      %v892 = vpop.f32.mrb[0].mxu0
      %v893 = vadd.f32 0.0, %v892
      %v894 = vpop.f32.mrb[0].mxu0
      %v895 = vpop.f32.mrb[0].mxu0
      %v896 = vadd.f32 0.0, %v895
      %v897 = vpop.f32.mrb[0].mxu0
      %898 = vmatprep.mubr.bf16.mxu0 0
      %899 = vmatmul.mubr.bf16.gmra.mrb[0].mxu0 %v767
      %v900 = vpop.f32.mrb[0].mxu0
      %v901 = vadd.f32 0.0, %v900
      %v902 = vpop.f32.mrb[0].mxu0
      %v903 = vpop.f32.mrb[0].mxu0
      %v904 = vadd.f32 0.0, %v903
      %v905 = vpop.f32.mrb[0].mxu0
      %906 = vmatprep.mubr.bf16.mxu0 0
      %907 = vmatmul.mubr.bf16.gmra.mrb[0].mxu0 %v770
      %v908 = vpop.f32.mrb[0].mxu0
      %v909 = vadd.f32 0.0, %v908
      %v910 = vpop.f32.mrb[0].mxu0
      %v911 = vpop.f32.mrb[0].mxu0
      %v912 = vadd.f32 0.0, %v911
      %v913 = vpop.f32.mrb[0].mxu0
      %914 = vmatprep.mubr.bf16.mxu0 0
      %915 = vmatmul.mubr.bf16.gmra.mrb[0].mxu0 %v773
      %v916 = vpop.f32.mrb[0].mxu0
      %v917 = vadd.f32 0.0, %v916
      %v918 = vpop.f32.mrb[0].mxu0
      %v919 = vpop.f32.mrb[0].mxu0
      %v920 = vadd.f32 0.0, %v919
      %v921 = vpop.f32.mrb[0].mxu0
      %922 = vmatprep.mubr.bf16.mxu0 0
      %923 = vmatmul.mubr.bf16.gmra.mrb[0].mxu0 %v776
      %v924 = vpop.f32.mrb[0].mxu0
      %v925 = vadd.f32 0.0, %v924
      %v926 = vpop.f32.mrb[0].mxu0
      %v927 = vpop.f32.mrb[0].mxu0
      %v928 = vadd.f32 0.0, %v927
      %v929 = vpop.f32.mrb[0].mxu0
      %930 = vmatprep.mubr.bf16.mxu0 0
      %931 = vmatmul.mubr.bf16.gmra.mrb[0].mxu0 %v779
      %v932 = vpop.f32.mrb[0].mxu0
      %v933 = vadd.f32 0.0, %v932
      %v934 = vpop.f32.mrb[0].mxu0
      %v935 = vpop.f32.mrb[0].mxu0
      %v936 = vadd.f32 0.0, %v935
      %v937 = vpop.f32.mrb[0].mxu0
      %938 = vmatprep.mubr.bf16.mxu0 0
      %939 = vmatmul.mubr.bf16.gmra.mrb[0].mxu0 %v782
      %v940 = vpop.f32.mrb[0].mxu0
      %v941 = vadd.f32 0.0, %v940
      %v942 = vpop.f32.mrb[0].mxu0
      %v943 = vpop.f32.mrb[0].mxu0
      %v944 = vadd.f32 0.0, %v943
      %v945 = vpop.f32.mrb[0].mxu0
      %946 = vmatprep.mubr.bf16.mxu0 0
      %947 = vmatmul.mubr.bf16.gmra.mrb[0].mxu0 %v785
      %v948 = vpop.f32.mrb[0].mxu0
      %v949 = vadd.f32 0.0, %v948
      %v950 = vpop.f32.mrb[0].mxu0
      %v951 = vpop.f32.mrb[0].mxu0
      %v952 = vadd.f32 0.0, %v951
      %v953 = vpop.f32.mrb[0].mxu0
      %954 = vmatprep.mubr.bf16.mxu0 0
      %955 = vmatmul.mubr.bf16.gmra.mrb[0].mxu0 %v788
      %v956 = vpop.f32.mrb[0].mxu0
      %v957 = vadd.f32 0.0, %v956
      %v958 = vpop.f32.mrb[0].mxu0
      %v959 = vpop.f32.mrb[0].mxu0
      %v960 = vadd.f32 0.0, %v959
      %v961 = vpop.f32.mrb[0].mxu0
      %962 = vdwg.mxu0
      %vm963 = vcmask 523264
      %v964 = vsel %vm963, %v837, -inf
      %965 = vmax.xlane.f32.xlu0 %v964
      %v966 = vpop.xlane.xlu0 %965
      %v967 = vsel %vm963, %v840, -inf
      %968 = vmax.xlane.f32.xlu0 %v967
      %v969 = vpop.xlane.xlu0 %968
      %v970 = vsel %vm963, %v845, -inf
      %971 = vmax.xlane.f32.xlu0 %v970
      %v972 = vpop.xlane.xlu0 %971
      %v973 = vsel %vm963, %v848, -inf
      %974 = vmax.xlane.f32.xlu0 %v973
      %v975 = vpop.xlane.xlu0 %974
      %v976 = vsel %vm963, %v853, -inf
      %977 = vmax.xlane.f32.xlu0 %v976
      %v978 = vpop.xlane.xlu0 %977
      %v979 = vsel %vm963, %v856, -inf
      %980 = vmax.xlane.f32.xlu0 %v979
      %v981 = vpop.xlane.xlu0 %980
      %v982 = vsel %vm963, %v861, -inf
      %983 = vmax.xlane.f32.xlu0 %v982
      %v984 = vpop.xlane.xlu0 %983
      %v985 = vsel %vm963, %v864, -inf
      %986 = vmax.xlane.f32.xlu0 %v985
      %v987 = vpop.xlane.xlu0 %986
      %v988 = vsel %vm963, %v869, -inf
      %989 = vmax.xlane.f32.xlu0 %v988
      %v990 = vpop.xlane.xlu0 %989
      %v991 = vsel %vm963, %v872, -inf
      %992 = vmax.xlane.f32.xlu0 %v991
      %v993 = vpop.xlane.xlu0 %992
      %v994 = vsel %vm963, %v877, -inf
      %995 = vmax.xlane.f32.xlu0 %v994
      %v996 = vpop.xlane.xlu0 %995
      %v997 = vsel %vm963, %v880, -inf
      %998 = vmax.xlane.f32.xlu0 %v997
      %v999 = vpop.xlane.xlu0 %998
      %v1000 = vsel %vm963, %v885, -inf
      %1001 = vmax.xlane.f32.xlu0 %v1000
      %v1002 = vpop.xlane.xlu0 %1001
      %v1003 = vsel %vm963, %v888, -inf
      %1004 = vmax.xlane.f32.xlu0 %v1003
      %v1005 = vpop.xlane.xlu0 %1004
      %v1006 = vsel %vm963, %v893, -inf
      %1007 = vmax.xlane.f32.xlu0 %v1006
      %v1008 = vpop.xlane.xlu0 %1007
      %v1009 = vsel %vm963, %v896, -inf
      %1010 = vmax.xlane.f32.xlu0 %v1009
      %v1011 = vpop.xlane.xlu0 %1010
      %v1012 = vsel %vm963, %v901, -inf
      %1013 = vmax.xlane.f32.xlu0 %v1012
      %v1014 = vpop.xlane.xlu0 %1013
      %v1015 = vsel %vm963, %v904, -inf
      %1016 = vmax.xlane.f32.xlu0 %v1015
      %v1017 = vpop.xlane.xlu0 %1016
      %v1018 = vsel %vm963, %v909, -inf
      %1019 = vmax.xlane.f32.xlu0 %v1018
      %v1020 = vpop.xlane.xlu0 %1019
      %v1021 = vsel %vm963, %v912, -inf
      %1022 = vmax.xlane.f32.xlu0 %v1021
      %v1023 = vpop.xlane.xlu0 %1022
      %v1024 = vsel %vm963, %v917, -inf
      %1025 = vmax.xlane.f32.xlu0 %v1024
      %v1026 = vpop.xlane.xlu0 %1025
      %v1027 = vsel %vm963, %v920, -inf
      %1028 = vmax.xlane.f32.xlu0 %v1027
      %v1029 = vpop.xlane.xlu0 %1028
      %v1030 = vsel %vm963, %v925, -inf
      %1031 = vmax.xlane.f32.xlu0 %v1030
      %v1032 = vpop.xlane.xlu0 %1031
      %v1033 = vsel %vm963, %v928, -inf
      %1034 = vmax.xlane.f32.xlu0 %v1033
      %v1035 = vpop.xlane.xlu0 %1034
      %v1036 = vsel %vm963, %v933, -inf
      %1037 = vmax.xlane.f32.xlu0 %v1036
      %v1038 = vpop.xlane.xlu0 %1037
      %v1039 = vsel %vm963, %v936, -inf
      %1040 = vmax.xlane.f32.xlu0 %v1039
      %v1041 = vpop.xlane.xlu0 %1040
      %v1042 = vsel %vm963, %v941, -inf
      %1043 = vmax.xlane.f32.xlu0 %v1042
      %v1044 = vpop.xlane.xlu0 %1043
      %v1045 = vsel %vm963, %v944, -inf
      %1046 = vmax.xlane.f32.xlu0 %v1045
      %v1047 = vpop.xlane.xlu0 %1046
      %v1048 = vsel %vm963, %v949, -inf
      %1049 = vmax.xlane.f32.xlu0 %v1048
      %v1050 = vpop.xlane.xlu0 %1049
      %v1051 = vsel %vm963, %v952, -inf
      %1052 = vmax.xlane.f32.xlu0 %v1051
      %v1053 = vpop.xlane.xlu0 %1052
      %v1054 = vsel %vm963, %v957, -inf
      %1055 = vmax.xlane.f32.xlu0 %v1054
      %v1056 = vpop.xlane.xlu0 %1055
      %v1057 = vsel %vm963, %v960, -inf
      %1058 = vmax.xlane.f32.xlu0 %v1057
      %v1059 = vpop.xlane.xlu0 %1058
      %v1060 = vsub.f32 %v837, %v966
      %v1061 = vsub.f32 %v840, %v969
      %v1062 = vsub.f32 %v845, %v972
      %v1063 = vsub.f32 %v848, %v975
      %v1064 = vsub.f32 %v853, %v978
      %v1065 = vsub.f32 %v856, %v981
      %v1066 = vsub.f32 %v861, %v984
      %v1067 = vsub.f32 %v864, %v987
      %v1068 = vsub.f32 %v869, %v990
      %v1069 = vsub.f32 %v872, %v993
      %v1070 = vsub.f32 %v877, %v996
      %v1071 = vsub.f32 %v880, %v999
      %v1072 = vsub.f32 %v885, %v1002
      %v1073 = vsub.f32 %v888, %v1005
      %v1074 = vsub.f32 %v893, %v1008
      %v1075 = vsub.f32 %v896, %v1011
      %v1076 = vsub.f32 %v901, %v1014
      %v1077 = vsub.f32 %v904, %v1017
      %v1078 = vsub.f32 %v909, %v1020
      %v1079 = vsub.f32 %v912, %v1023
      %v1080 = vsub.f32 %v917, %v1026
      %v1081 = vsub.f32 %v920, %v1029
      %v1082 = vsub.f32 %v925, %v1032
      %v1083 = vsub.f32 %v928, %v1035
      %v1084 = vsub.f32 %v933, %v1038
      %v1085 = vsub.f32 %v936, %v1041
      %v1086 = vsub.f32 %v941, %v1044
      %v1087 = vsub.f32 %v944, %v1047
      %v1088 = vsub.f32 %v949, %v1050
      %v1089 = vsub.f32 %v952, %v1053
      %v1090 = vsub.f32 %v957, %v1056
      %v1091 = vsub.f32 %v960, %v1059
      %v1092 = vmul.f32 %v1060, 1.442695
      %v1093 = vpow.pop %v1092
      %v1094 = vmul.f32 %v1061, 1.442695
      %v1095 = vpow.pop %v1094
      %v1096 = vmul.f32 %v1062, 1.442695
      %v1097 = vpow.pop %v1096
      %v1098 = vmul.f32 %v1063, 1.442695
      %v1099 = vpow.pop %v1098
      %v1100 = vmul.f32 %v1064, 1.442695
      %v1101 = vpow.pop %v1100
      %v1102 = vmul.f32 %v1065, 1.442695
      %v1103 = vpow.pop %v1102
      %v1104 = vmul.f32 %v1066, 1.442695
      %v1105 = vpow.pop %v1104
      %v1106 = vmul.f32 %v1067, 1.442695
      %v1107 = vpow.pop %v1106
      %v1108 = vmul.f32 %v1068, 1.442695
      %v1109 = vpow.pop %v1108
      %v1110 = vmul.f32 %v1069, 1.442695
      %v1111 = vpow.pop %v1110
      %v1112 = vmul.f32 %v1070, 1.442695
      %v1113 = vpow.pop %v1112
      %v1114 = vmul.f32 %v1071, 1.442695
      %v1115 = vpow.pop %v1114
      %v1116 = vmul.f32 %v1072, 1.442695
      %v1117 = vpow.pop %v1116
      %v1118 = vmul.f32 %v1073, 1.442695
      %v1119 = vpow.pop %v1118
      %v1120 = vmul.f32 %v1074, 1.442695
      %v1121 = vpow.pop %v1120
      %v1122 = vmul.f32 %v1075, 1.442695
      %v1123 = vpow.pop %v1122
      %v1124 = vmul.f32 %v1076, 1.442695
      %v1125 = vpow.pop %v1124
      %v1126 = vmul.f32 %v1077, 1.442695
      %v1127 = vpow.pop %v1126
      %v1128 = vmul.f32 %v1078, 1.442695
      %v1129 = vpow.pop %v1128
      %v1130 = vmul.f32 %v1079, 1.442695
      %v1131 = vpow.pop %v1130
      %v1132 = vmul.f32 %v1080, 1.442695
      %v1133 = vpow.pop %v1132
      %v1134 = vmul.f32 %v1081, 1.442695
      %v1135 = vpow.pop %v1134
      %v1136 = vmul.f32 %v1082, 1.442695
      %v1137 = vpow.pop %v1136
      %v1138 = vmul.f32 %v1083, 1.442695
      %v1139 = vpow.pop %v1138
      %v1140 = vmul.f32 %v1084, 1.442695
      %v1141 = vpow.pop %v1140
      %v1142 = vmul.f32 %v1085, 1.442695
      %v1143 = vpow.pop %v1142
      %v1144 = vmul.f32 %v1086, 1.442695
      %v1145 = vpow.pop %v1144
      %v1146 = vmul.f32 %v1087, 1.442695
      %v1147 = vpow.pop %v1146
      %v1148 = vmul.f32 %v1088, 1.442695
      %v1149 = vpow.pop %v1148
      %v1150 = vmul.f32 %v1089, 1.442695
      %v1151 = vpow.pop %v1150
      %v1152 = vmul.f32 %v1090, 1.442695
      %v1153 = vpow.pop %v1152
      %v1154 = vmul.f32 %v1091, 1.442695
      %v1155 = vpow.pop %v1154
      %v1156 = vsel %vm963, %v1093, 0.0
      %1157 = vadd.xlane.f32.xlu0 %v1156
      %v1158 = vpop.xlane.xlu0 %1157
      %v1159 = vsel %vm963, %v1095, 0.0
      %1160 = vadd.xlane.f32.xlu0 %v1159
      %v1161 = vpop.xlane.xlu0 %1160
      %v1162 = vsel %vm963, %v1097, 0.0
      %1163 = vadd.xlane.f32.xlu0 %v1162
      %v1164 = vpop.xlane.xlu0 %1163
      %v1165 = vsel %vm963, %v1099, 0.0
      %1166 = vadd.xlane.f32.xlu0 %v1165
      %v1167 = vpop.xlane.xlu0 %1166
      %v1168 = vsel %vm963, %v1101, 0.0
      %1169 = vadd.xlane.f32.xlu0 %v1168
      %v1170 = vpop.xlane.xlu0 %1169
      %v1171 = vsel %vm963, %v1103, 0.0
      %1172 = vadd.xlane.f32.xlu0 %v1171
      %v1173 = vpop.xlane.xlu0 %1172
      %v1174 = vsel %vm963, %v1105, 0.0
      %1175 = vadd.xlane.f32.xlu0 %v1174
      %v1176 = vpop.xlane.xlu0 %1175
      %v1177 = vsel %vm963, %v1107, 0.0
      %1178 = vadd.xlane.f32.xlu0 %v1177
      %v1179 = vpop.xlane.xlu0 %1178
      %v1180 = vsel %vm963, %v1109, 0.0
      %1181 = vadd.xlane.f32.xlu0 %v1180
      %v1182 = vpop.xlane.xlu0 %1181
      %v1183 = vsel %vm963, %v1111, 0.0
      %1184 = vadd.xlane.f32.xlu0 %v1183
      %v1185 = vpop.xlane.xlu0 %1184
      %v1186 = vsel %vm963, %v1113, 0.0
      %1187 = vadd.xlane.f32.xlu0 %v1186
      %v1188 = vpop.xlane.xlu0 %1187
      %v1189 = vsel %vm963, %v1115, 0.0
      %1190 = vadd.xlane.f32.xlu0 %v1189
      %v1191 = vpop.xlane.xlu0 %1190
      %v1192 = vsel %vm963, %v1117, 0.0
      %1193 = vadd.xlane.f32.xlu0 %v1192
      %v1194 = vpop.xlane.xlu0 %1193
      %v1195 = vsel %vm963, %v1119, 0.0
      %1196 = vadd.xlane.f32.xlu0 %v1195
      %v1197 = vpop.xlane.xlu0 %1196
      %v1198 = vsel %vm963, %v1121, 0.0
      %1199 = vadd.xlane.f32.xlu0 %v1198
      %v1200 = vpop.xlane.xlu0 %1199
      %v1201 = vsel %vm963, %v1123, 0.0
      %1202 = vadd.xlane.f32.xlu0 %v1201
      %v1203 = vpop.xlane.xlu0 %1202
      %v1204 = vsel %vm963, %v1125, 0.0
      %1205 = vadd.xlane.f32.xlu0 %v1204
      %v1206 = vpop.xlane.xlu0 %1205
      %v1207 = vsel %vm963, %v1127, 0.0
      %1208 = vadd.xlane.f32.xlu0 %v1207
      %v1209 = vpop.xlane.xlu0 %1208
      %v1210 = vsel %vm963, %v1129, 0.0
      %1211 = vadd.xlane.f32.xlu0 %v1210
      %v1212 = vpop.xlane.xlu0 %1211
      %v1213 = vsel %vm963, %v1131, 0.0
      %1214 = vadd.xlane.f32.xlu0 %v1213
      %v1215 = vpop.xlane.xlu0 %1214
      %v1216 = vsel %vm963, %v1133, 0.0
      %1217 = vadd.xlane.f32.xlu0 %v1216
      %v1218 = vpop.xlane.xlu0 %1217
      %v1219 = vsel %vm963, %v1135, 0.0
      %1220 = vadd.xlane.f32.xlu0 %v1219
      %v1221 = vpop.xlane.xlu0 %1220
      %v1222 = vsel %vm963, %v1137, 0.0
      %1223 = vadd.xlane.f32.xlu0 %v1222
      %v1224 = vpop.xlane.xlu0 %1223
      %v1225 = vsel %vm963, %v1139, 0.0
      %1226 = vadd.xlane.f32.xlu0 %v1225
      %v1227 = vpop.xlane.xlu0 %1226
      %v1228 = vsel %vm963, %v1141, 0.0
      %1229 = vadd.xlane.f32.xlu0 %v1228
      %v1230 = vpop.xlane.xlu0 %1229
      %v1231 = vsel %vm963, %v1143, 0.0
      %1232 = vadd.xlane.f32.xlu0 %v1231
      %v1233 = vpop.xlane.xlu0 %1232
      %v1234 = vsel %vm963, %v1145, 0.0
      %1235 = vadd.xlane.f32.xlu0 %v1234
      %v1236 = vpop.xlane.xlu0 %1235
      %v1237 = vsel %vm963, %v1147, 0.0
      %1238 = vadd.xlane.f32.xlu0 %v1237
      %v1239 = vpop.xlane.xlu0 %1238
      %v1240 = vsel %vm963, %v1149, 0.0
      %1241 = vadd.xlane.f32.xlu0 %v1240
      %v1242 = vpop.xlane.xlu0 %1241
      %v1243 = vsel %vm963, %v1151, 0.0
      %1244 = vadd.xlane.f32.xlu0 %v1243
      %v1245 = vpop.xlane.xlu0 %1244
      %v1246 = vsel %vm963, %v1153, 0.0
      %1247 = vadd.xlane.f32.xlu0 %v1246
      %v1248 = vpop.xlane.xlu0 %1247
      %v1249 = vsel %vm963, %v1155, 0.0
      %1250 = vadd.xlane.f32.xlu0 %v1249
      %v1251 = vpop.xlane.xlu0 %1250
      %v1252 = vrcp.pop %v1158
      %v1253 = vrcp.pop %v1161
      %v1254 = vrcp.pop %v1164
      %v1255 = vrcp.pop %v1167
      %v1256 = vrcp.pop %v1170
      %v1257 = vrcp.pop %v1173
      %v1258 = vrcp.pop %v1176
      %v1259 = vrcp.pop %v1179
      %v1260 = vrcp.pop %v1182
      %v1261 = vrcp.pop %v1185
      %v1262 = vrcp.pop %v1188
      %v1263 = vrcp.pop %v1191
      %v1264 = vrcp.pop %v1194
      %v1265 = vrcp.pop %v1197
      %v1266 = vrcp.pop %v1200
      %v1267 = vrcp.pop %v1203
      %v1268 = vrcp.pop %v1206
      %v1269 = vrcp.pop %v1209
      %v1270 = vrcp.pop %v1212
      %v1271 = vrcp.pop %v1215
      %v1272 = vrcp.pop %v1218
      %v1273 = vrcp.pop %v1221
      %v1274 = vrcp.pop %v1224
      %v1275 = vrcp.pop %v1227
      %v1276 = vrcp.pop %v1230
      %v1277 = vrcp.pop %v1233
      %v1278 = vrcp.pop %v1236
      %v1279 = vrcp.pop %v1239
      %v1280 = vrcp.pop %v1242
      %v1281 = vrcp.pop %v1245
      %v1282 = vrcp.pop %v1248
      %v1283 = vrcp.pop %v1251
      %v1284 = vmul.f32 %v1093, %v1252
      %v1285 = vmul.f32 %v1095, %v1253
      %v1286 = vmul.f32 %v1097, %v1254
      %v1287 = vmul.f32 %v1099, %v1255
      %v1288 = vmul.f32 %v1101, %v1256
      %v1289 = vmul.f32 %v1103, %v1257
      %v1290 = vmul.f32 %v1105, %v1258
      %v1291 = vmul.f32 %v1107, %v1259
      %v1292 = vmul.f32 %v1109, %v1260
      %v1293 = vmul.f32 %v1111, %v1261
      %v1294 = vmul.f32 %v1113, %v1262
      %v1295 = vmul.f32 %v1115, %v1263
      %v1296 = vmul.f32 %v1117, %v1264
      %v1297 = vmul.f32 %v1119, %v1265
      %v1298 = vmul.f32 %v1121, %v1266
      %v1299 = vmul.f32 %v1123, %v1267
      %v1300 = vmul.f32 %v1125, %v1268
      %v1301 = vmul.f32 %v1127, %v1269
      %v1302 = vmul.f32 %v1129, %v1270
      %v1303 = vmul.f32 %v1131, %v1271
      %v1304 = vmul.f32 %v1133, %v1272
      %v1305 = vmul.f32 %v1135, %v1273
      %v1306 = vmul.f32 %v1137, %v1274
      %v1307 = vmul.f32 %v1139, %v1275
      %v1308 = vmul.f32 %v1141, %v1276
      %v1309 = vmul.f32 %v1143, %v1277
      %v1310 = vmul.f32 %v1145, %v1278
      %v1311 = vmul.f32 %v1147, %v1279
      %v1312 = vmul.f32 %v1149, %v1280
      %v1313 = vmul.f32 %v1151, %v1281
      %v1314 = vmul.f32 %v1153, %v1282
      %v1315 = vmul.f32 %v1155, %v1283
      %v1316 = vpack.c.bf16 %v1285, %v1284
      %v1317 = vpack.c.bf16 %v1287, %v1286
      %v1318 = vpack.c.bf16 %v1289, %v1288
      %v1319 = vpack.c.bf16 %v1291, %v1290
      %v1320 = vpack.c.bf16 %v1293, %v1292
      %v1321 = vpack.c.bf16 %v1295, %v1294
      %v1322 = vpack.c.bf16 %v1297, %v1296
      %v1323 = vpack.c.bf16 %v1299, %v1298
      %v1324 = vpack.c.bf16 %v1301, %v1300
      %v1325 = vpack.c.bf16 %v1303, %v1302
      %v1326 = vpack.c.bf16 %v1305, %v1304
      %v1327 = vpack.c.bf16 %v1307, %v1306
      %v1328 = vpack.c.bf16 %v1309, %v1308
      %v1329 = vpack.c.bf16 %v1311, %v1310
      %v1330 = vpack.c.bf16 %v1313, %v1312
      %v1331 = vpack.c.bf16 %v1315, %v1314
      %v1332 = vld [vmem:[#allocation4] sm:$0xff]
      %v1333 = vld [vmem:[#allocation4 + $0x8] sm:$0xff]
      %v1334 = vld [vmem:[#allocation4 + $0x10] sm:$0xff]
      %v1335 = vld [vmem:[#allocation4 + $0x18] sm:$0xff]
      %v1337 = vsel %vm963, %v1316, 0
      %v1340 = vsel %vm963, %v1317, 0
      %v1343 = vsel %vm963, %v1318, 0
      %v1346 = vsel %vm963, %v1319, 0
      %v1349 = vsel %vm963, %v1320, 0
      %v1352 = vsel %vm963, %v1321, 0
      %v1355 = vsel %vm963, %v1322, 0
      %v1358 = vsel %vm963, %v1323, 0
      %v1361 = vsel %vm963, %v1324, 0
      %v1364 = vsel %vm963, %v1325, 0
      %v1367 = vsel %vm963, %v1326, 0
      %v1370 = vsel %vm963, %v1327, 0
      %v1373 = vsel %vm963, %v1328, 0
      %v1376 = vsel %vm963, %v1329, 0
      %v1379 = vsel %vm963, %v1330, 0
      %v1382 = vsel %vm963, %v1331, 0
      %1384 = vmatprep.subr.bf16.mxu0 0
      %1385 = vmatpush1.bf16.msra.mxu0 %v1332
      %1386 = vmatprep.subr.bf16.mxu0 0
      %1387 = vmatpush1.bf16.msra.mxu0 %v1333
      %1388 = vmatprep.subr.bf16.mxu0 0
      %1389 = vmatpush1.bf16.msra.mxu0 %v1334
      %1390 = vmatprep.subr.bf16.mxu0 0
      %1391 = vmatpush1.bf16.msra.mxu0 %v1335
      %1392 = vmatprep.subr.bf16.mxu0 0
      %1393 = vmatpush1.bf16.msra.mxu0 0
      %1394 = vmatprep.subr.bf16.mxu0 0
      %1395 = vmatpush1.bf16.msra.mxu0 0
      %1396 = vmatprep.subr.bf16.mxu0 0
      %1397 = vmatpush1.bf16.msra.mxu0 0
      %1398 = vmatprep.subr.bf16.mxu0 0
      %1399 = vmatpush1.bf16.msra.mxu0 0
      %1400 = vmatprep.subr.bf16.mxu0 0
      %1401 = vmatpush1.bf16.msra.mxu0 0
      %1402 = vmatprep.subr.bf16.mxu0 0
      %1403 = vmatpush1.bf16.msra.mxu0 0
      %1404 = vmatprep.subr.bf16.mxu0 0
      %1405 = vmatpush1.bf16.msra.mxu0 0
      %1406 = vmatprep.subr.bf16.mxu0 0
      %1407 = vmatpush1.bf16.msra.mxu0 0
      %1408 = vmatprep.subr.bf16.mxu0 0
      %1409 = vmatpush1.bf16.msra.mxu0 0
      %1410 = vmatprep.subr.bf16.mxu0 0
      %1411 = vmatpush1.bf16.msra.mxu0 0
      %1412 = vmatprep.subr.bf16.mxu0 0
      %1413 = vmatpush1.bf16.msra.mxu0 0
      %1414 = vmatprep.subr.bf16.mxu0 0
      %1415 = vmatpush1.bf16.msra.mxu0 0
      %1416 = vmatprep.mubr.bf16.mxu0 0
      %1417 = vmatmul.mubr.bf16.gmra.mrb[0].mxu0 %v1337
      %v1418 = vpop.f32.mrb[0].mxu0
      %v1419 = vadd.f32 0.0, %v1418
      %v1420 = vpop.f32.mrb[0].mxu0
      %v1421 = vpop.f32.mrb[0].mxu0
      %v1422 = vadd.f32 0.0, %v1421
      %v1423 = vpop.f32.mrb[0].mxu0
      %1424 = vmatprep.mubr.bf16.mxu0 0
      %1425 = vmatmul.mubr.bf16.gmra.mrb[0].mxu0 %v1340
      %v1426 = vpop.f32.mrb[0].mxu0
      %v1427 = vadd.f32 0.0, %v1426
      %v1428 = vpop.f32.mrb[0].mxu0
      %v1429 = vpop.f32.mrb[0].mxu0
      %v1430 = vadd.f32 0.0, %v1429
      %v1431 = vpop.f32.mrb[0].mxu0
      %1432 = vmatprep.mubr.bf16.mxu0 0
      %1433 = vmatmul.mubr.bf16.gmra.mrb[0].mxu0 %v1343
      %v1434 = vpop.f32.mrb[0].mxu0
      %v1435 = vadd.f32 0.0, %v1434
      %v1436 = vpop.f32.mrb[0].mxu0
      %v1437 = vpop.f32.mrb[0].mxu0
      %v1438 = vadd.f32 0.0, %v1437
      %v1439 = vpop.f32.mrb[0].mxu0
      %1440 = vmatprep.mubr.bf16.mxu0 0
      %1441 = vmatmul.mubr.bf16.gmra.mrb[0].mxu0 %v1346
      %v1442 = vpop.f32.mrb[0].mxu0
      %v1443 = vadd.f32 0.0, %v1442
      %v1444 = vpop.f32.mrb[0].mxu0
      %v1445 = vpop.f32.mrb[0].mxu0
      %v1446 = vadd.f32 0.0, %v1445
      %v1447 = vpop.f32.mrb[0].mxu0
      %1448 = vmatprep.mubr.bf16.mxu0 0
      %1449 = vmatmul.mubr.bf16.gmra.mrb[0].mxu0 %v1349
      %v1450 = vpop.f32.mrb[0].mxu0
      %v1451 = vadd.f32 0.0, %v1450
      %v1452 = vpop.f32.mrb[0].mxu0
      %v1453 = vpop.f32.mrb[0].mxu0
      %v1454 = vadd.f32 0.0, %v1453
      %v1455 = vpop.f32.mrb[0].mxu0
      %1456 = vmatprep.mubr.bf16.mxu0 0
      %1457 = vmatmul.mubr.bf16.gmra.mrb[0].mxu0 %v1352
      %v1458 = vpop.f32.mrb[0].mxu0
      %v1459 = vadd.f32 0.0, %v1458
      %v1460 = vpop.f32.mrb[0].mxu0
      %v1461 = vpop.f32.mrb[0].mxu0
      %v1462 = vadd.f32 0.0, %v1461
      %v1463 = vpop.f32.mrb[0].mxu0
      %1464 = vmatprep.mubr.bf16.mxu0 0
      %1465 = vmatmul.mubr.bf16.gmra.mrb[0].mxu0 %v1355
      %v1466 = vpop.f32.mrb[0].mxu0
      %v1467 = vadd.f32 0.0, %v1466
      %v1468 = vpop.f32.mrb[0].mxu0
      %v1469 = vpop.f32.mrb[0].mxu0
      %v1470 = vadd.f32 0.0, %v1469
      %v1471 = vpop.f32.mrb[0].mxu0
      %1472 = vmatprep.mubr.bf16.mxu0 0
      %1473 = vmatmul.mubr.bf16.gmra.mrb[0].mxu0 %v1358
      %v1474 = vpop.f32.mrb[0].mxu0
      %v1475 = vadd.f32 0.0, %v1474
      %v1476 = vpop.f32.mrb[0].mxu0
      %v1477 = vpop.f32.mrb[0].mxu0
      %v1478 = vadd.f32 0.0, %v1477
      %v1479 = vpop.f32.mrb[0].mxu0
      %1480 = vmatprep.mubr.bf16.mxu0 0
      %1481 = vmatmul.mubr.bf16.gmra.mrb[0].mxu0 %v1361
      %v1482 = vpop.f32.mrb[0].mxu0
      %v1483 = vadd.f32 0.0, %v1482
      %v1484 = vpop.f32.mrb[0].mxu0
      %v1485 = vpop.f32.mrb[0].mxu0
      %v1486 = vadd.f32 0.0, %v1485
      %v1487 = vpop.f32.mrb[0].mxu0
      %1488 = vmatprep.mubr.bf16.mxu0 0
      %1489 = vmatmul.mubr.bf16.gmra.mrb[0].mxu0 %v1364
      %v1490 = vpop.f32.mrb[0].mxu0
      %v1491 = vadd.f32 0.0, %v1490
      %v1492 = vpop.f32.mrb[0].mxu0
      %v1493 = vpop.f32.mrb[0].mxu0
      %v1494 = vadd.f32 0.0, %v1493
      %v1495 = vpop.f32.mrb[0].mxu0
      %1496 = vmatprep.mubr.bf16.mxu0 0
      %1497 = vmatmul.mubr.bf16.gmra.mrb[0].mxu0 %v1367
      %v1498 = vpop.f32.mrb[0].mxu0
      %v1499 = vadd.f32 0.0, %v1498
      %v1500 = vpop.f32.mrb[0].mxu0
      %v1501 = vpop.f32.mrb[0].mxu0
      %v1502 = vadd.f32 0.0, %v1501
      %v1503 = vpop.f32.mrb[0].mxu0
      %1504 = vmatprep.mubr.bf16.mxu0 0
      %1505 = vmatmul.mubr.bf16.gmra.mrb[0].mxu0 %v1370
      %v1506 = vpop.f32.mrb[0].mxu0
      %v1507 = vadd.f32 0.0, %v1506
      %v1508 = vpop.f32.mrb[0].mxu0
      %v1509 = vpop.f32.mrb[0].mxu0
      %v1510 = vadd.f32 0.0, %v1509
      %v1511 = vpop.f32.mrb[0].mxu0
      %1512 = vmatprep.mubr.bf16.mxu0 0
      %1513 = vmatmul.mubr.bf16.gmra.mrb[0].mxu0 %v1373
      %v1514 = vpop.f32.mrb[0].mxu0
      %v1515 = vadd.f32 0.0, %v1514
      %v1516 = vpop.f32.mrb[0].mxu0
      %v1517 = vpop.f32.mrb[0].mxu0
      %v1518 = vadd.f32 0.0, %v1517
      %v1519 = vpop.f32.mrb[0].mxu0
      %1520 = vmatprep.mubr.bf16.mxu0 0
      %1521 = vmatmul.mubr.bf16.gmra.mrb[0].mxu0 %v1376
      %v1522 = vpop.f32.mrb[0].mxu0
      %v1523 = vadd.f32 0.0, %v1522
      %v1524 = vpop.f32.mrb[0].mxu0
      %v1525 = vpop.f32.mrb[0].mxu0
      %v1526 = vadd.f32 0.0, %v1525
      %v1527 = vpop.f32.mrb[0].mxu0
      %1528 = vmatprep.mubr.bf16.mxu0 0
      %1529 = vmatmul.mubr.bf16.gmra.mrb[0].mxu0 %v1379
      %v1530 = vpop.f32.mrb[0].mxu0
      %v1531 = vadd.f32 0.0, %v1530
      %v1532 = vpop.f32.mrb[0].mxu0
      %v1533 = vpop.f32.mrb[0].mxu0
      %v1534 = vadd.f32 0.0, %v1533
      %v1535 = vpop.f32.mrb[0].mxu0
      %1536 = vmatprep.mubr.bf16.mxu0 0
      %1537 = vmatmul.mubr.bf16.gmra.mrb[0].mxu0 %v1382
      %v1538 = vpop.f32.mrb[0].mxu0
      %v1539 = vadd.f32 0.0, %v1538
      %v1540 = vpop.f32.mrb[0].mxu0
      %v1541 = vpop.f32.mrb[0].mxu0
      %v1542 = vadd.f32 0.0, %v1541
      %v1543 = vpop.f32.mrb[0].mxu0
      %1544 = vdwg.mxu0
      %v1545 = vpack.c.bf16 %v1422, %v1419
      %v1546 = vpack.c.bf16 %v1430, %v1427
      %v1547 = vpack.c.bf16 %v1438, %v1435
      %v1548 = vpack.c.bf16 %v1446, %v1443
      %v1549 = vpack.c.bf16 %v1454, %v1451
      %v1550 = vpack.c.bf16 %v1462, %v1459
      %v1551 = vpack.c.bf16 %v1470, %v1467
      %v1552 = vpack.c.bf16 %v1478, %v1475
      %v1553 = vpack.c.bf16 %v1486, %v1483
      %v1554 = vpack.c.bf16 %v1494, %v1491
      %v1555 = vpack.c.bf16 %v1502, %v1499
      %v1556 = vpack.c.bf16 %v1510, %v1507
      %v1557 = vpack.c.bf16 %v1518, %v1515
      %v1558 = vpack.c.bf16 %v1526, %v1523
      %v1559 = vpack.c.bf16 %v1534, %v1531
      %v1560 = vpack.c.bf16 %v1542, %v1539
      %v1561 = vld [vmem:[%s3] sm:$0xf]
      %v1562 = vld [vmem:[%s4] sm:$0x1]
      %v1564 = vlaneseq
      %v1565 = vshrl.u32 %v1564, 7
      %v1566 = vsub.s32 0, %v1565
      %v1567 = vrot.slane %v1562, %v1566
      %vm1569 = vcmask 64512
      %v1571 = vsel %vm1569, %v1545, 0
      %v1574 = vsel %vm1569, %v1546, 0
      %v1577 = vsel %vm1569, %v1547, 0
      %v1580 = vsel %vm1569, %v1548, 0
      %v1583 = vsel %vm1569, %v1549, 0
      %v1586 = vsel %vm1569, %v1550, 0
      %v1589 = vsel %vm1569, %v1551, 0
      %v1592 = vsel %vm1569, %v1552, 0
      %v1595 = vsel %vm1569, %v1553, 0
      %v1598 = vsel %vm1569, %v1554, 0
      %v1601 = vsel %vm1569, %v1555, 0
      %v1604 = vsel %vm1569, %v1556, 0
      %v1607 = vsel %vm1569, %v1557, 0
      %v1610 = vsel %vm1569, %v1558, 0
      %v1613 = vsel %vm1569, %v1559, 0
      %v1616 = vsel %vm1569, %v1560, 0
      %vm1618 = vcmask 1043456
      %v1620 = vsel %vm1618, %v1561, 0
      %1622 = vmatprep.subr.bf16.mxu0 0
      %1623 = vmatpush1.bf16.msra.mxu0 %v1620
      %1624 = vmatprep.subr.bf16.mxu0 0
      %1625 = vmatpush1.bf16.msra.mxu0 0
      %1626 = vmatprep.subr.bf16.mxu0 0
      %1627 = vmatpush1.bf16.msra.mxu0 0
      %1628 = vmatprep.subr.bf16.mxu0 0
      %1629 = vmatpush1.bf16.msra.mxu0 0
      %1630 = vmatprep.subr.bf16.mxu0 0
      %1631 = vmatpush1.bf16.msra.mxu0 0
      %1632 = vmatprep.subr.bf16.mxu0 0
      %1633 = vmatpush1.bf16.msra.mxu0 0
      %1634 = vmatprep.subr.bf16.mxu0 0
      %1635 = vmatpush1.bf16.msra.mxu0 0
      %1636 = vmatprep.subr.bf16.mxu0 0
      %1637 = vmatpush1.bf16.msra.mxu0 0
      %1638 = vmatprep.subr.bf16.mxu0 0
      %1639 = vmatpush1.bf16.msra.mxu0 0
      %1640 = vmatprep.subr.bf16.mxu0 0
      %1641 = vmatpush1.bf16.msra.mxu0 0
      %1642 = vmatprep.subr.bf16.mxu0 0
      %1643 = vmatpush1.bf16.msra.mxu0 0
      %1644 = vmatprep.subr.bf16.mxu0 0
      %1645 = vmatpush1.bf16.msra.mxu0 0
      %1646 = vmatprep.subr.bf16.mxu0 0
      %1647 = vmatpush1.bf16.msra.mxu0 0
      %1648 = vmatprep.subr.bf16.mxu0 0
      %1649 = vmatpush1.bf16.msra.mxu0 0
      %1650 = vmatprep.subr.bf16.mxu0 0
      %1651 = vmatpush1.bf16.msra.mxu0 0
      %1652 = vmatprep.subr.bf16.mxu0 0
      %1653 = vmatpush1.bf16.msra.mxu0 0
      %1654 = vmatprep.mubr.bf16.mxu0 0
      %1655 = vmatmul.mubr.bf16.gmra.mrb[0].mxu0 %v1571
      %v1656 = vpop.f32.mrb[0].mxu0
      %v1657 = vadd.f32 %v1567, %v1656
      %v1658 = vpop.f32.mrb[0].mxu0
      %v1659 = vpop.f32.mrb[0].mxu0
      %v1660 = vadd.f32 %v1567, %v1659
      %v1661 = vpop.f32.mrb[0].mxu0
      %1662 = vmatprep.mubr.bf16.mxu0 0
      %1663 = vmatmul.mubr.bf16.gmra.mrb[0].mxu0 %v1574
      %v1664 = vpop.f32.mrb[0].mxu0
      %v1665 = vadd.f32 %v1567, %v1664
      %v1666 = vpop.f32.mrb[0].mxu0
      %v1667 = vpop.f32.mrb[0].mxu0
      %v1668 = vadd.f32 %v1567, %v1667
      %v1669 = vpop.f32.mrb[0].mxu0
      %1670 = vmatprep.mubr.bf16.mxu0 0
      %1671 = vmatmul.mubr.bf16.gmra.mrb[0].mxu0 %v1577
      %v1672 = vpop.f32.mrb[0].mxu0
      %v1673 = vadd.f32 %v1567, %v1672
      %v1674 = vpop.f32.mrb[0].mxu0
      %v1675 = vpop.f32.mrb[0].mxu0
      %v1676 = vadd.f32 %v1567, %v1675
      %v1677 = vpop.f32.mrb[0].mxu0
      %1678 = vmatprep.mubr.bf16.mxu0 0
      %1679 = vmatmul.mubr.bf16.gmra.mrb[0].mxu0 %v1580
      %v1680 = vpop.f32.mrb[0].mxu0
      %v1681 = vadd.f32 %v1567, %v1680
      %v1682 = vpop.f32.mrb[0].mxu0
      %v1683 = vpop.f32.mrb[0].mxu0
      %v1684 = vadd.f32 %v1567, %v1683
      %v1685 = vpop.f32.mrb[0].mxu0
      %1686 = vmatprep.mubr.bf16.mxu0 0
      %1687 = vmatmul.mubr.bf16.gmra.mrb[0].mxu0 %v1583
      %v1688 = vpop.f32.mrb[0].mxu0
      %v1689 = vadd.f32 %v1567, %v1688
      %v1690 = vpop.f32.mrb[0].mxu0
      %v1691 = vpop.f32.mrb[0].mxu0
      %v1692 = vadd.f32 %v1567, %v1691
      %v1693 = vpop.f32.mrb[0].mxu0
      %1694 = vmatprep.mubr.bf16.mxu0 0
      %1695 = vmatmul.mubr.bf16.gmra.mrb[0].mxu0 %v1586
      %v1696 = vpop.f32.mrb[0].mxu0
      %v1697 = vadd.f32 %v1567, %v1696
      %v1698 = vpop.f32.mrb[0].mxu0
      %v1699 = vpop.f32.mrb[0].mxu0
      %v1700 = vadd.f32 %v1567, %v1699
      %v1701 = vpop.f32.mrb[0].mxu0
      %1702 = vmatprep.mubr.bf16.mxu0 0
      %1703 = vmatmul.mubr.bf16.gmra.mrb[0].mxu0 %v1589
      %v1704 = vpop.f32.mrb[0].mxu0
      %v1705 = vadd.f32 %v1567, %v1704
      %v1706 = vpop.f32.mrb[0].mxu0
      %v1707 = vpop.f32.mrb[0].mxu0
      %v1708 = vadd.f32 %v1567, %v1707
      %v1709 = vpop.f32.mrb[0].mxu0
      %1710 = vmatprep.mubr.bf16.mxu0 0
      %1711 = vmatmul.mubr.bf16.gmra.mrb[0].mxu0 %v1592
      %v1712 = vpop.f32.mrb[0].mxu0
      %v1713 = vadd.f32 %v1567, %v1712
      %v1714 = vpop.f32.mrb[0].mxu0
      %v1715 = vpop.f32.mrb[0].mxu0
      %v1716 = vadd.f32 %v1567, %v1715
      %v1717 = vpop.f32.mrb[0].mxu0
      %1718 = vmatprep.mubr.bf16.mxu0 0
      %1719 = vmatmul.mubr.bf16.gmra.mrb[0].mxu0 %v1595
      %v1720 = vpop.f32.mrb[0].mxu0
      %v1721 = vadd.f32 %v1567, %v1720
      %v1722 = vpop.f32.mrb[0].mxu0
      %v1723 = vpop.f32.mrb[0].mxu0
      %v1724 = vadd.f32 %v1567, %v1723
      %v1725 = vpop.f32.mrb[0].mxu0
      %1726 = vmatprep.mubr.bf16.mxu0 0
      %1727 = vmatmul.mubr.bf16.gmra.mrb[0].mxu0 %v1598
      %v1728 = vpop.f32.mrb[0].mxu0
      %v1729 = vadd.f32 %v1567, %v1728
      %v1730 = vpop.f32.mrb[0].mxu0
      %v1731 = vpop.f32.mrb[0].mxu0
      %v1732 = vadd.f32 %v1567, %v1731
      %v1733 = vpop.f32.mrb[0].mxu0
      %1734 = vmatprep.mubr.bf16.mxu0 0
      %1735 = vmatmul.mubr.bf16.gmra.mrb[0].mxu0 %v1601
      %v1736 = vpop.f32.mrb[0].mxu0
      %v1737 = vadd.f32 %v1567, %v1736
      %v1738 = vpop.f32.mrb[0].mxu0
      %v1739 = vpop.f32.mrb[0].mxu0
      %v1740 = vadd.f32 %v1567, %v1739
      %v1741 = vpop.f32.mrb[0].mxu0
      %1742 = vmatprep.mubr.bf16.mxu0 0
      %1743 = vmatmul.mubr.bf16.gmra.mrb[0].mxu0 %v1604
      %v1744 = vpop.f32.mrb[0].mxu0
      %v1745 = vadd.f32 %v1567, %v1744
      %v1746 = vpop.f32.mrb[0].mxu0
      %v1747 = vpop.f32.mrb[0].mxu0
      %v1748 = vadd.f32 %v1567, %v1747
      %v1749 = vpop.f32.mrb[0].mxu0
      %1750 = vmatprep.mubr.bf16.mxu0 0
      %1751 = vmatmul.mubr.bf16.gmra.mrb[0].mxu0 %v1607
      %v1752 = vpop.f32.mrb[0].mxu0
      %v1753 = vadd.f32 %v1567, %v1752
      %v1754 = vpop.f32.mrb[0].mxu0
      %v1755 = vpop.f32.mrb[0].mxu0
      %v1756 = vadd.f32 %v1567, %v1755
      %v1757 = vpop.f32.mrb[0].mxu0
      %1758 = vmatprep.mubr.bf16.mxu0 0
      %1759 = vmatmul.mubr.bf16.gmra.mrb[0].mxu0 %v1610
      %v1760 = vpop.f32.mrb[0].mxu0
      %v1761 = vadd.f32 %v1567, %v1760
      %v1762 = vpop.f32.mrb[0].mxu0
      %v1763 = vpop.f32.mrb[0].mxu0
      %v1764 = vadd.f32 %v1567, %v1763
      %v1765 = vpop.f32.mrb[0].mxu0
      %1766 = vmatprep.mubr.bf16.mxu0 0
      %1767 = vmatmul.mubr.bf16.gmra.mrb[0].mxu0 %v1613
      %v1768 = vpop.f32.mrb[0].mxu0
      %v1769 = vadd.f32 %v1567, %v1768
      %v1770 = vpop.f32.mrb[0].mxu0
      %v1771 = vpop.f32.mrb[0].mxu0
      %v1772 = vadd.f32 %v1567, %v1771
      %v1773 = vpop.f32.mrb[0].mxu0
      %1774 = vmatprep.mubr.bf16.mxu0 0
      %1775 = vmatmul.mubr.bf16.gmra.mrb[0].mxu0 %v1616
      %v1776 = vpop.f32.mrb[0].mxu0
      %v1777 = vadd.f32 %v1567, %v1776
      %v1778 = vpop.f32.mrb[0].mxu0
      %v1779 = vpop.f32.mrb[0].mxu0
      %v1780 = vadd.f32 %v1567, %v1779
      %v1781 = vpop.f32.mrb[0].mxu0
      %1782 = vdwg.mxu0
      %s1783 = sshra.s32 %s716, 3
      %s1784 = sand.u32 %s716, 7
      %s1785 = smul.addr %s1783, 4
      %s1786 = scalar_lea.vmem %s265, %s1785
      %v1787 = vld [vmem:[%s1786] sm:$0xf]
      %v1788 = vld [vmem:[%s1786 + $0x4] sm:$0xf]
      %v1789 = vld [vmem:[%s1786 + $0x8] sm:$0xf]
      %v1790 = vld [vmem:[%s1786 + $0xc] sm:$0xf]
      %v1791 = vld [vmem:[%s1786 + $0x10] sm:$0xf]
      %v1792 = vld [vmem:[%s1786 + $0x14] sm:$0xf]
      %v1793 = vld [vmem:[%s1786 + $0x18] sm:$0xf]
      %v1794 = vld [vmem:[%s1786 + $0x1c] sm:$0xf]
      %v1795 = vld [vmem:[%s1786 + $0x20] sm:$0xf]
      %v1796 = vld [vmem:[%s1786 + $0x24] sm:$0xf]
      %v1797 = vld [vmem:[%s1786 + $0x28] sm:$0xf]
      %v1798 = vld [vmem:[%s1786 + $0x2c] sm:$0xf]
      %v1799 = vld [vmem:[%s1786 + $0x30] sm:$0xf]
      %v1800 = vld [vmem:[%s1786 + $0x34] sm:$0xf]
      %v1801 = vld [vmem:[%s1786 + $0x38] sm:$0xf]
      %v1802 = vld [vmem:[%s1786 + $0x3c] sm:$0xf]
      %v1803 = vld [vmem:[%s1786 + $0x40] sm:$0xf]
      %v1804 = vld [vmem:[%s1786 + $0x44] sm:$0xf]
      %v1805 = vld [vmem:[%s1786 + $0x48] sm:$0xf]
      %v1806 = vld [vmem:[%s1786 + $0x4c] sm:$0xf]
      %v1807 = vld [vmem:[%s1786 + $0x50] sm:$0xf]
      %v1808 = vld [vmem:[%s1786 + $0x54] sm:$0xf]
      %v1809 = vld [vmem:[%s1786 + $0x58] sm:$0xf]
      %v1810 = vld [vmem:[%s1786 + $0x5c] sm:$0xf]
      %v1811 = vld [vmem:[%s1786 + $0x60] sm:$0xf]
      %v1812 = vld [vmem:[%s1786 + $0x64] sm:$0xf]
      %v1813 = vld [vmem:[%s1786 + $0x68] sm:$0xf]
      %v1814 = vld [vmem:[%s1786 + $0x6c] sm:$0xf]
      %v1815 = vld [vmem:[%s1786 + $0x70] sm:$0xf]
      %v1816 = vld [vmem:[%s1786 + $0x74] sm:$0xf]
      %v1817 = vld [vmem:[%s1786 + $0x78] sm:$0xf]
      %v1818 = vld [vmem:[%s1786 + $0x7c] sm:$0xf]
      %v1819 = vunpack.c.l.bf16 %v1787
      %v1820 = vunpack.c.l.bf16 %v1788
      %v1821 = vunpack.c.l.bf16 %v1789
      %v1822 = vunpack.c.l.bf16 %v1790
      %v1823 = vunpack.c.l.bf16 %v1791
      %v1824 = vunpack.c.l.bf16 %v1792
      %v1825 = vunpack.c.l.bf16 %v1793
      %v1826 = vunpack.c.l.bf16 %v1794
      %v1827 = vunpack.c.l.bf16 %v1795
      %v1828 = vunpack.c.l.bf16 %v1796
      %v1829 = vunpack.c.l.bf16 %v1797
      %v1830 = vunpack.c.l.bf16 %v1798
      %v1831 = vunpack.c.l.bf16 %v1799
      %v1832 = vunpack.c.l.bf16 %v1800
      %v1833 = vunpack.c.l.bf16 %v1801
      %v1834 = vunpack.c.l.bf16 %v1802
      %v1835 = vunpack.c.l.bf16 %v1803
      %v1836 = vunpack.c.l.bf16 %v1804
      %v1837 = vunpack.c.l.bf16 %v1805
      %v1838 = vunpack.c.l.bf16 %v1806
      %v1839 = vunpack.c.l.bf16 %v1807
      %v1840 = vunpack.c.l.bf16 %v1808
      %v1841 = vunpack.c.l.bf16 %v1809
      %v1842 = vunpack.c.l.bf16 %v1810
      %v1843 = vunpack.c.l.bf16 %v1811
      %v1844 = vunpack.c.l.bf16 %v1812
      %v1845 = vunpack.c.l.bf16 %v1813
      %v1846 = vunpack.c.l.bf16 %v1814
      %v1847 = vunpack.c.l.bf16 %v1815
      %v1848 = vunpack.c.l.bf16 %v1816
      %v1849 = vunpack.c.l.bf16 %v1817
      %v1850 = vunpack.c.l.bf16 %v1818
      %s1851 = sld [smem:[#allocation5]]
      %v1852 = vstv %s1851
      %v1853 = vmul.f32 %v1852, %v1657
      %v1854 = vmul.f32 %v1852, %v1660
      %v1855 = vmul.f32 %v1852, %v1665
      %v1856 = vmul.f32 %v1852, %v1668
      %v1857 = vmul.f32 %v1852, %v1673
      %v1858 = vmul.f32 %v1852, %v1676
      %v1859 = vmul.f32 %v1852, %v1681
      %v1860 = vmul.f32 %v1852, %v1684
      %v1861 = vmul.f32 %v1852, %v1689
      %v1862 = vmul.f32 %v1852, %v1692
      %v1863 = vmul.f32 %v1852, %v1697
      %v1864 = vmul.f32 %v1852, %v1700
      %v1865 = vmul.f32 %v1852, %v1705
      %v1866 = vmul.f32 %v1852, %v1708
      %v1867 = vmul.f32 %v1852, %v1713
      %v1868 = vmul.f32 %v1852, %v1716
      %v1869 = vmul.f32 %v1852, %v1721
      %v1870 = vmul.f32 %v1852, %v1724
      %v1871 = vmul.f32 %v1852, %v1729
      %v1872 = vmul.f32 %v1852, %v1732
      %v1873 = vmul.f32 %v1852, %v1737
      %v1874 = vmul.f32 %v1852, %v1740
      %v1875 = vmul.f32 %v1852, %v1745
      %v1876 = vmul.f32 %v1852, %v1748
      %v1877 = vmul.f32 %v1852, %v1753
      %v1878 = vmul.f32 %v1852, %v1756
      %v1879 = vmul.f32 %v1852, %v1761
      %v1880 = vmul.f32 %v1852, %v1764
      %v1881 = vmul.f32 %v1852, %v1769
      %v1882 = vmul.f32 %v1852, %v1772
      %v1883 = vmul.f32 %v1852, %v1777
      %v1884 = vmul.f32 %v1852, %v1780
      %v1885 = vadd.f32 %v1819, %v1853
      %v1886 = vadd.f32 %v1820, %v1854
      %v1887 = vadd.f32 %v1821, %v1855
      %v1888 = vadd.f32 %v1822, %v1856
      %v1889 = vadd.f32 %v1823, %v1857
      %v1890 = vadd.f32 %v1824, %v1858
      %v1891 = vadd.f32 %v1825, %v1859
      %v1892 = vadd.f32 %v1826, %v1860
      %v1893 = vadd.f32 %v1827, %v1861
      %v1894 = vadd.f32 %v1828, %v1862
      %v1895 = vadd.f32 %v1829, %v1863
      %v1896 = vadd.f32 %v1830, %v1864
      %v1897 = vadd.f32 %v1831, %v1865
      %v1898 = vadd.f32 %v1832, %v1866
      %v1899 = vadd.f32 %v1833, %v1867
      %v1900 = vadd.f32 %v1834, %v1868
      %v1901 = vadd.f32 %v1835, %v1869
      %v1902 = vadd.f32 %v1836, %v1870
      %v1903 = vadd.f32 %v1837, %v1871
      %v1904 = vadd.f32 %v1838, %v1872
      %v1905 = vadd.f32 %v1839, %v1873
      %v1906 = vadd.f32 %v1840, %v1874
      %v1907 = vadd.f32 %v1841, %v1875
      %v1908 = vadd.f32 %v1842, %v1876
      %v1909 = vadd.f32 %v1843, %v1877
      %v1910 = vadd.f32 %v1844, %v1878
      %v1911 = vadd.f32 %v1845, %v1879
      %v1912 = vadd.f32 %v1846, %v1880
      %v1913 = vadd.f32 %v1847, %v1881
      %v1914 = vadd.f32 %v1848, %v1882
      %v1915 = vadd.f32 %v1849, %v1883
      %v1916 = vadd.f32 %v1850, %v1884
      %vm1917 = vcmask 130048
      %1918 = vst.msk [vmem:[%s274] sm:$0xff] %vm1917, %v1885
      %1919 = vst.msk [vmem:[%s274 + $0x8] sm:$0xff] %vm1917, %v1886
      %1920 = vst.msk [vmem:[%s274 + $0x10] sm:$0xff] %vm1917, %v1887
      %1921 = vst.msk [vmem:[%s274 + $0x18] sm:$0xff] %vm1917, %v1888
      %1922 = vst.msk [vmem:[%s274 + $0x20] sm:$0xff] %vm1917, %v1889
      %1923 = vst.msk [vmem:[%s274 + $0x28] sm:$0xff] %vm1917, %v1890
      %1924 = vst.msk [vmem:[%s274 + $0x30] sm:$0xff] %vm1917, %v1891
      %1925 = vst.msk [vmem:[%s274 + $0x38] sm:$0xff] %vm1917, %v1892
      %1926 = vst.msk [vmem:[%s274 + $0x40] sm:$0xff] %vm1917, %v1893
      %1927 = vst.msk [vmem:[%s274 + $0x48] sm:$0xff] %vm1917, %v1894
      %1928 = vst.msk [vmem:[%s274 + $0x50] sm:$0xff] %vm1917, %v1895
      %1929 = vst.msk [vmem:[%s274 + $0x58] sm:$0xff] %vm1917, %v1896
      %1930 = vst.msk [vmem:[%s274 + $0x60] sm:$0xff] %vm1917, %v1897
      %1931 = vst.msk [vmem:[%s274 + $0x68] sm:$0xff] %vm1917, %v1898
      %1932 = vst.msk [vmem:[%s274 + $0x70] sm:$0xff] %vm1917, %v1899
      %1933 = vst.msk [vmem:[%s274 + $0x78] sm:$0xff] %vm1917, %v1900
      %1934 = vst.msk [vmem:[%s274 + $0x80] sm:$0xff] %vm1917, %v1901
      %1935 = vst.msk [vmem:[%s274 + $0x88] sm:$0xff] %vm1917, %v1902
      %1936 = vst.msk [vmem:[%s274 + $0x90] sm:$0xff] %vm1917, %v1903
      %1937 = vst.msk [vmem:[%s274 + $0x98] sm:$0xff] %vm1917, %v1904
      %1938 = vst.msk [vmem:[%s274 + $0xa0] sm:$0xff] %vm1917, %v1905
      %1939 = vst.msk [vmem:[%s274 + $0xa8] sm:$0xff] %vm1917, %v1906
      %1940 = vst.msk [vmem:[%s274 + $0xb0] sm:$0xff] %vm1917, %v1907
      %1941 = vst.msk [vmem:[%s274 + $0xb8] sm:$0xff] %vm1917, %v1908
      %1942 = vst.msk [vmem:[%s274 + $0xc0] sm:$0xff] %vm1917, %v1909
      %1943 = vst.msk [vmem:[%s274 + $0xc8] sm:$0xff] %vm1917, %v1910
      %1944 = vst.msk [vmem:[%s274 + $0xd0] sm:$0xff] %vm1917, %v1911
      %1945 = vst.msk [vmem:[%s274 + $0xd8] sm:$0xff] %vm1917, %v1912
      %1946 = vst.msk [vmem:[%s274 + $0xe0] sm:$0xff] %vm1917, %v1913
      %1947 = vst.msk [vmem:[%s274 + $0xe8] sm:$0xff] %vm1917, %v1914
      %1948 = vst.msk [vmem:[%s274 + $0xf0] sm:$0xff] %vm1917, %v1915
      %1949 = vst.msk [vmem:[%s274 + $0xf8] sm:$0xff] %vm1917, %v1916
      %s1950 = smul.u32 32, %s23
      %p1951 = scmp.lt.s32.totalorder %s22, 1
      %s1952 = scalar_select %p1951, %s22, 1
      %p1953 = scmp.lt.s32.totalorder %s1950, 31
      %s1954 = scalar_select %p1953, %s1950, 31
      %s1955 = smul.addr %s1952, 32
      %s1956 = sadd.s32 %s1954, %s1955
      %s1957 = smul.addr %s1956, 8
      %s1958 = scalar_lea.vmem %s6, %s1957
      // Predicated region
      $region49: #{_lambda_.1} parent=43 // pred_check
        %p1959 = pneg %p181
      $region50: #{_lambda_.1} parent=43 // pred_check_branch
        %1961 = sbr.rel (%p1959) target = $region52
      $region51: #{_lambda_.1} parent=43 // pred_region
        %s1962 = smul.u32 32, %s23
      $region52: #{_lambda_.1} parent=43 // pred_fallthru
        _
    $region44: #{_lambda_.1} parent=5 // pred_fallthru
      _
    %p1963 = scmp.le.s32.totalorder 2, %s13
    // Predicated region
    $region53: #{_lambda_.1} parent=5 // pred_check
      %p1964 = pneg %p1963
    $region54: #{_lambda_.1} parent=5 // pred_check_branch
      %1966 = sbr.rel (%p1964) target = $region56
    $region55: #{_lambda_.1} parent=5 // pred_region
      %s1967 = ssub.s32 %s13, 2
      // Predicated region
      $region57: #{_lambda_.1} parent=55 // pred_check
        %p1968 = pneg %p187
      $region58: #{_lambda_.1} parent=55 // pred_check_branch
        %1970 = sbr.rel (%p1968) target = $region60
      $region59: #{_lambda_.1} parent=55 // pred_region
        %s1971 = smul.u32 32, %s25
        %p1972 = scmp.lt.s32.totalorder %s24, 1
        %s1973 = scalar_select %p1972, %s24, 1
        %p1974 = scmp.lt.s32.totalorder %s1971, 31
        %s1975 = scalar_select %p1974, %s1971, 31
        %s1976 = smul.addr %s1973, 32
        %s1977 = sadd.s32 %s1975, %s1976
        %s1978 = smul.addr %s1977, 8
        %s1979 = scalar_lea.vmem %s6, %s1978
      $region60: #{_lambda_.1} parent=55 // pred_fallthru
        _
    $region56: #{_lambda_.1} parent=5 // pred_fallthru
      _
  $region6: #{_lambda_.1} parent=0 // loop_footer
    %s17 = sadd.s32 1, %s13
  $region7: #{_lambda_.1} parent=0 // loop_footer_branch
    %12 = sbr.rel target = $region3
  $region8: #{_lambda_.1} parent=0 // loop_exit
    _

</llo_original>
